<compile_context>
chip_gen: v7x
topology: tpu7x:2x2x1
jax: 0.10.0
libtpu: 0.0.40
codegen_flags: <defaults>
</compile_context>

<pallas_src>
import functools
import numpy as np
import jax
import jax.numpy as jnp
from jax.experimental import pallas as pl
from jax.experimental.pallas import tpu as pltpu


def _round_up(x, m):
    return (x + m - 1) // m * m


def _row_tile(M, C, elem_bytes=4, budget=2 << 20):
    """Row tile for memory-bound (rows, C) kernels: big tiles, bounded VMEM."""
    cap = max(8, min(1024, (budget // (elem_bytes * max(C, 1))) // 8 * 8))
    Mr = _round_up(M, 8)
    return Mr if Mr <= cap else cap


def _mm_tiles(M, N, K):
    TM = _round_up(M, 8) if M <= 1024 else 512
    TN = N if N <= 512 else 512
    TK = K if K <= 2048 else 512
    return TM, TN, TK


def _pad2(x, rows, cols):
    pr, pc = rows - x.shape[0], cols - x.shape[1]
    if pr or pc:
        x = jnp.pad(x, ((0, pr), (0, pc)))
    return x


# --------------------------------------------------------------------------------------
# Pallas kernels
# --------------------------------------------------------------------------------------
def _mm_kernel(*refs, activation, has_gamma, has_res):
    a_ref, b_ref, bias_ref = refs[0], refs[1], refs[2]
    idx = 3
    gamma_ref = None
    res_ref = None
    if has_gamma:
        gamma_ref = refs[idx]
        idx += 1
    if has_res:
        res_ref = refs[idx]
        idx += 1
    o_ref = refs[idx]
    acc_ref = refs[idx + 1]

    k = pl.program_id(2)

    @pl.when(k == 0)
    def _init():
        acc_ref[...] = jnp.zeros_like(acc_ref)

    acc_ref[...] += jnp.dot(a_ref[...], b_ref[...], preferred_element_type=jnp.float32)

    @pl.when(k == pl.num_programs(2) - 1)
    def _finalize():
        y = acc_ref[...] + bias_ref[...]
        if activation == "relu":
            y = jnp.maximum(y, 0.0)
        elif activation == "gelu":
            y = jax.nn.gelu(y, approximate=True)
        if has_gamma:
            y = y * gamma_ref[...]
        if has_res:
            y = y + res_ref[...]
        o_ref[...] = y


@functools.partial(jax.jit, static_argnames=("activation",))
def _matmul_impl(a, b, bias, gamma, residual, *, activation):
    M, K = a.shape
    K2, N = b.shape
    assert K == K2
    has_gamma = gamma is not None
    has_res = residual is not None

    TM, TN, TK = _mm_tiles(M, N, K)
    Mp, Np, Kp = _round_up(M, TM), _round_up(N, TN), _round_up(K, TK)

    ab = _pad2(a.astype(jnp.bfloat16), Mp, Kp)
    bb = _pad2(b.astype(jnp.bfloat16), Kp, Np)
    bias_v = jnp.zeros((N,), jnp.float32) if bias is None else bias.astype(jnp.float32)
    bias2 = _pad2(bias_v.reshape(1, N), 1, Np)

    ins = [ab, bb, bias2]
    in_specs = [
        pl.BlockSpec((TM, TK), lambda i, j, k: (i, k)),
        pl.BlockSpec((TK, TN), lambda i, j, k: (k, j)),
        pl.BlockSpec((1, TN), lambda i, j, k: (0, j)),
    ]
    if has_gamma:
        ins.append(_pad2(gamma.astype(jnp.float32).reshape(1, N), 1, Np))
        in_specs.append(pl.BlockSpec((1, TN), lambda i, j, k: (0, j)))
    if has_res:
        ins.append(_pad2(residual.astype(jnp.float32), Mp, Np))
        in_specs.append(pl.BlockSpec((TM, TN), lambda i, j, k: (i, j)))

    out = pl.pallas_call(
        functools.partial(_mm_kernel, activation=activation,
                          has_gamma=has_gamma, has_res=has_res),
        out_shape=jax.ShapeDtypeStruct((Mp, Np), jnp.float32),
        grid=(Mp // TM, Np // TN, Kp // TK),
        in_specs=in_specs,
        out_specs=pl.BlockSpec((TM, TN), lambda i, j, k: (i, j)),
        scratch_shapes=[pltpu.VMEM((TM, TN), jnp.float32)],
        compiler_params=pltpu.CompilerParams(
            dimension_semantics=("parallel", "parallel", "arbitrary")),
    )(*ins)
    if Mp != M or Np != N:
        out = out[:M, :N]
    return out


def matmul(a, b, bias=None, *, activation=None, gamma=None, residual=None):
    """(M, K) @ (K, N) with fused bias / activation / gamma-scale / residual epilogue."""
    return _matmul_impl(a, b, bias, gamma, residual, activation=activation)


def _ln_kernel(x_ref, w_ref, b_ref, o_ref, *, eps):
    x = x_ref[...]
    mu = jnp.mean(x, axis=-1, keepdims=True)
    var = jnp.mean(jnp.square(x - mu), axis=-1, keepdims=True)
    o_ref[...] = (x - mu) * jax.lax.rsqrt(var + eps) * w_ref[...] + b_ref[...]


@jax.jit
def layernorm(x, w, b):
    """LayerNorm over last dim, eps=1e-6 (matches partial(nn.LayerNorm, eps=1e-6))."""
    orig = x.shape
    Dm = orig[-1]
    x2 = x.reshape(-1, Dm).astype(jnp.float32)
    M = x2.shape[0]
    TM = _row_tile(M, Dm)
    Mp = _round_up(M, TM)
    if Mp != M:
        x2 = jnp.pad(x2, ((0, Mp - M), (0, 0)))
    out = pl.pallas_call(
        functools.partial(_ln_kernel, eps=1e-6),
        out_shape=jax.ShapeDtypeStruct((Mp, Dm), jnp.float32),
        grid=(Mp // TM,),
        in_specs=[
            pl.BlockSpec((TM, Dm), lambda i: (i, 0)),
            pl.BlockSpec((1, Dm), lambda i: (0, 0)),
            pl.BlockSpec((1, Dm), lambda i: (0, 0)),
        ],
        out_specs=pl.BlockSpec((TM, Dm), lambda i: (i, 0)),
        compiler_params=pltpu.CompilerParams(dimension_semantics=("parallel",)),
    )(x2, w.reshape(1, Dm).astype(jnp.float32), b.reshape(1, Dm).astype(jnp.float32))
    return out[:M].reshape(orig)


def _affine_kernel(x_ref, s_ref, t_ref, o_ref, *, relu):
    y = x_ref[...] * s_ref[...] + t_ref[...]
    if relu:
        y = jnp.maximum(y, 0.0)
    o_ref[...] = y


@functools.partial(jax.jit, static_argnames=("relu",))
def batchnorm_rows(x2, w, b, *, relu=False, eps=1e-5):
    """Training-mode BatchNorm on (rows, C): stats via XLA reduction, normalize in Pallas."""
    M, C = x2.shape
    x2 = x2.astype(jnp.float32)
    mean = jnp.mean(x2, axis=0)
    var = jnp.maximum(jnp.mean(jnp.square(x2), axis=0) - jnp.square(mean), 0.0)
    scale = w.astype(jnp.float32) * jax.lax.rsqrt(var + eps)
    shift = b.astype(jnp.float32) - mean * scale
    TM = _row_tile(M, C)
    Mp = _round_up(M, TM)
    xp = jnp.pad(x2, ((0, Mp - M), (0, 0))) if Mp != M else x2
    out = pl.pallas_call(
        functools.partial(_affine_kernel, relu=relu),
        out_shape=jax.ShapeDtypeStruct((Mp, C), jnp.float32),
        grid=(Mp // TM,),
        in_specs=[
            pl.BlockSpec((TM, C), lambda i: (i, 0)),
            pl.BlockSpec((1, C), lambda i: (0, 0)),
            pl.BlockSpec((1, C), lambda i: (0, 0)),
        ],
        out_specs=pl.BlockSpec((TM, C), lambda i: (i, 0)),
        compiler_params=pltpu.CompilerParams(dimension_semantics=("parallel",)),
    )(xp, scale.reshape(1, C), shift.reshape(1, C))
    return out[:M]


def _attn_kernel(q_ref, k_ref, v_ref, o_ref, *, scale, num_heads):
    q = q_ref[0]     # (Tq, Dm) bf16
    k = k_ref[0]     # (Tk, Dm) bf16
    v = v_ref[0]
    dh = q.shape[-1] // num_heads
    outs = []
    for h in range(num_heads):
        qh = q[:, h * dh:(h + 1) * dh]
        kh = k[:, h * dh:(h + 1) * dh]
        vh = v[:, h * dh:(h + 1) * dh]
        s = jax.lax.dot_general(qh, kh, (((1,), (1,)), ((), ())),
                                preferred_element_type=jnp.float32) * scale
        m = jnp.max(s, axis=-1, keepdims=True)
        p = jnp.exp(s - m)
        p = p / jnp.sum(p, axis=-1, keepdims=True)
        outs.append(jnp.dot(p.astype(v.dtype), vh, preferred_element_type=jnp.float32))
    o_ref[0] = jnp.concatenate(outs, axis=-1)


@functools.partial(jax.jit, static_argnames=("num_heads", "kv_repeat"))
def mh_attention(q, k, v, *, num_heads, kv_repeat=1):
    """Fused MHA. q: (Bq, Tq, D); k, v: (Bk, Tk, D) with Bq = Bk * kv_repeat.

    Lane-dense (1, T, D) blocks; heads split inside the kernel; K/V broadcast across the
    per-input-channel batch via the index_map (i // kv_repeat) instead of jnp.repeat."""
    Bq, Tq, Dm = q.shape
    Bk, Tk, _ = k.shape
    assert Bq == Bk * kv_repeat
    assert Dm % num_heads == 0, "embed dim must be divisible by num_heads"
    dh = Dm // num_heads
    scale = 1.0 / float(np.sqrt(dh))
    qb = q.astype(jnp.bfloat16)
    kb = k.astype(jnp.bfloat16)
    vb = v.astype(jnp.bfloat16)
    return pl.pallas_call(
        functools.partial(_attn_kernel, scale=scale, num_heads=num_heads),
        out_shape=jax.ShapeDtypeStruct((Bq, Tq, Dm), jnp.float32),
        grid=(Bq,),
        in_specs=[
            pl.BlockSpec((1, Tq, Dm), lambda i: (i, 0, 0)),
            pl.BlockSpec((1, Tk, Dm), lambda i: (i // kv_repeat, 0, 0)),
            pl.BlockSpec((1, Tk, Dm), lambda i: (i // kv_repeat, 0, 0)),
        ],
        out_specs=pl.BlockSpec((1, Tq, Dm), lambda i: (i, 0, 0)),
        compiler_params=pltpu.CompilerParams(dimension_semantics=("parallel",)),
    )(qb, kb, vb)


# --------------------------------------------------------------------------------------
# JAX glue built on the kernels (channels-last everywhere)
# --------------------------------------------------------------------------------------
def linear(x, w, b=None, activation=None, gamma=None, residual=None):
    orig = x.shape
    res2 = residual.reshape(-1, w.shape[1]) if residual is not None else None
    out = matmul(x.reshape(-1, orig[-1]), w, b,
                 activation=activation, gamma=gamma, residual=res2)
    return out.reshape(orig[:-1] + (w.shape[1],))


def patch_conv_cl(x, w, b, s, activation=None):
    """Conv3d with kernel==stride==s, channels-last, as patchify + Pallas matmul."""
    B, A1, A2, A3, C = x.shape
    o1, o2, o3 = A1 // s, A2 // s, A3 // s
    xr = x.reshape(B, o1, s, o2, s, o3, s, C)
    xr = xr.transpose(0, 1, 3, 5, 2, 4, 6, 7).reshape(B * o1 * o2 * o3, s * s * s * C)
    y = matmul(xr, w, b, activation=activation)
    return y.reshape(B, o1, o2, o3, w.shape[1])


def conv1x1_cl(x, w, b):
    """1x1x1 Conv3d, channels-last: plain matmul on flattened rows (no transposes)."""
    shp = x.shape
    y = matmul(x.reshape(-1, shp[-1]), w, b)
    return y.reshape(shp[:-1] + (w.shape[1],))


def conv_transpose_up2_cl(x, w, b):
    """ConvTranspose3d(kernel=2, stride=2), channels-last: matmul (+fused bias) + shuffle."""
    B, A1, A2, A3, C = x.shape
    Cout = w.shape[1] // 8
    y = matmul(x.reshape(-1, C), w, jnp.tile(b, 8))          # bias per (offset, Cout) column
    y = y.reshape(B, A1, A2, A3, 2, 2, 2, Cout)
    y = y.transpose(0, 1, 4, 2, 5, 3, 6, 7).reshape(B, 2 * A1, 2 * A2, 2 * A3, Cout)
    return y


def bn_cl(x, w, b, relu=False):
    shp = x.shape
    y = batchnorm_rows(x.reshape(-1, shp[-1]), w, b, relu=relu)
    return y.reshape(shp)


def _interp_matrix(lin, lout):
    """align_corners=False linear interpolation matrix (lout, lin)."""
    M = np.zeros((lout, lin), np.float32)
    for o in range(lout):
        src = (o + 0.5) * lin / lout - 0.5
        src = min(max(src, 0.0), lin - 1)
        i0 = int(np.floor(src))
        i1 = min(i0 + 1, lin - 1)
        w1 = src - i0
        M[o, i0] += 1.0 - w1
        M[o, i1] += w1
    return jnp.asarray(M)


def trilinear_cl(x, size):
    """F.interpolate(mode='trilinear', align_corners=False), channels-last.

    Per-axis interp matrices are tiny (<=64 wide); kept as jnp einsums so the channel axis
    stays on the lane dimension (no masked-store Pallas matmuls with N=2..64)."""
    eqs = ("oi,bijkc->bojkc", "oj,bijkc->biokc", "ok,bijkc->bijoc")
    for ax, lo, eq in zip((1, 2, 3), size, eqs):
        lin = x.shape[ax]
        if lin == lo:
            continue
        x = jnp.einsum(eq, _interp_matrix(lin, lo), x)
    return x


# --------------------------------------------------------------------------------------
# Sub-modules
# --------------------------------------------------------------------------------------
def spm_forward(p, xcl, level_embed):
    s2 = patch_conv_cl(xcl, p["stem_w"], p["stem_b"], 2)
    s2 = bn_cl(s2, p["bn1_w"], p["bn1_b"], relu=True)
    s4 = patch_conv_cl(s2, p["conv2_w"], p["conv2_b"], 2)
    s4 = bn_cl(s4, p["bn2_w"], p["bn2_b"], relu=True)
    s8 = patch_conv_cl(s4, p["conv3_w"], p["conv3_b"], 2)
    s8 = bn_cl(s8, p["bn3_w"], p["bn3_b"], relu=True)
    s16 = patch_conv_cl(s8, p["conv4_w"], p["conv4_b"], 2)
    s16 = bn_cl(s16, p["bn4_w"], p["bn4_b"], relu=True)
    c1 = conv1x1_cl(s2, p["fc1_w"], p["fc1_b"])
    # level_embed adds are per-channel constants -> fused into the 1x1-conv biases
    c2 = conv1x1_cl(s4, p["fc2_w"], p["fc2_b"] + level_embed[0])
    c3 = conv1x1_cl(s8, p["fc3_w"], p["fc3_b"] + level_embed[1])
    c4 = conv1x1_cl(s16, p["fc4_w"], p["fc4_b"] + level_embed[2])
    bs, dim = c1.shape[0], c1.shape[-1]
    return c1, c2.reshape(bs, -1, dim), c3.reshape(bs, -1, dim), c4.reshape(bs, -1, dim)


def vit_block(p, x, num_heads):
    h = layernorm(x, p["ln1_w"], p["ln1_b"])
    qkv = linear(h, p["qkv_w"], p["qkv_b"])
    q, k, v = jnp.split(qkv, 3, axis=-1)
    a = mh_attention(q, k, v, num_heads=num_heads)
    x = linear(a, p["proj_w"], p["proj_b"], residual=x)               # fused residual add
    h = layernorm(x, p["ln2_w"], p["ln2_b"])
    h = linear(h, p["fc1_w"], p["fc1_b"], activation="gelu")
    return linear(h, p["fc2_w"], p["fc2_b"], residual=x)              # fused residual add


def cross_attn(p, q_in, feat, num_heads, kv_repeat=1, gamma=None, residual=None):
    q = linear(q_in, p["q_w"], p["q_b"])
    k = linear(feat, p["k_w"], p["k_b"])
    v = linear(feat, p["v_w"], p["v_b"])
    a = mh_attention(q, k, v, num_heads=num_heads, kv_repeat=kv_repeat)
    # fused gamma-scale + residual epilogue on the output projection
    return linear(a, p["o_w"], p["o_b"], gamma=gamma, residual=residual)


def injector(p, x, c, num_heads, cin):
    q = layernorm(x, p["ln_q_w"], p["ln_q_b"])
    f = layernorm(c, p["ln_f_w"], p["ln_f_b"])
    # x + gamma * attn(q, f): K/V broadcast across input channels via index_map (kv_repeat)
    return cross_attn(p["attn"], q, f, num_heads, kv_repeat=cin,
                      gamma=p["gamma"], residual=x)


def extractor(p, c, x, num_heads, bs):
    q = layernorm(c, p["ln_q_w"], p["ln_q_b"])
    feat = x.reshape(bs, -1, x.shape[-1])
    f = layernorm(feat, p["ln_f_w"], p["ln_f_b"])
    c = cross_attn(p["attn"], q, f, num_heads, residual=c)
    h = layernorm(c, p["ffn_ln_w"], p["ffn_ln_b"])
    h = linear(h, p["ffn_fc1_w"], p["ffn_fc1_b"], activation="gelu")
    return linear(h, p["ffn_fc2_w"], p["ffn_fc2_b"], residual=c)


def interaction_block(p, blocks, x, c, cls, vit_heads, deform_heads, cin, bs):
    x = injector(p["injector"], x, c, deform_heads, cin)
    for bp in blocks:
        t = jnp.concatenate([cls, x], axis=1)
        t = vit_block(bp, t, vit_heads)
        cls, x = t[:, :1], t[:, 1:]
    c = extractor(p["extractor"], c, x, deform_heads, bs)
    for ep in p["extra"]:
        c = extractor(ep, c, x, deform_heads, bs)
    return x, c, cls


# --------------------------------------------------------------------------------------
# Full ViTAdapter forward
# --------------------------------------------------------------------------------------
def vit_adapter_forward(P, x, cfg):
    bs, cin = x.shape[0], x.shape[1]
    X, Y, Z = x.shape[2], x.shape[3], x.shape[4]
    H, W, D = X // 16, Y // 16, Z // 16
    dim = cfg["dim"]

    xcl = jnp.transpose(x, (0, 2, 3, 4, 1))                   # single NCDHW -> channels-last

    c1, c2, c3, c4 = spm_forward(P["spm"], xcl, P["level_embed"])
    n2, n3 = c2.shape[1], c3.shape[1]
    c = jnp.concatenate([c2, c3, c4], axis=1)

    # patch embed (per input channel, single-channel "images"), channels-last
    xb = x.reshape(bs * cin, X, Y, Z)[..., None]
    tok = patch_conv_cl(xb, P["vit"]["patch_w"], P["vit"]["patch_b"], 16)
    tok = tok.reshape(bs * cin, H * W * D, dim)

    g = cfg["pos_grid"]
    pos = P["vit"]["pos_embed"][:, 1:].reshape(1, g, g, g, dim)
    pos = trilinear_cl(pos, (H, W, D)).reshape(1, H * W * D, dim)
    pos = jnp.concatenate([P["vit"]["pos_embed"][:, :1], pos], axis=1)

    cls = jnp.broadcast_to(P["vit"]["cls_token"], (bs * cin, 1, dim))
    tok = jnp.concatenate([cls, tok], axis=1) + pos
    cls, xt = tok[:, :1], tok[:, 1:]

    outs = []
    for i in range(4):
        xt, c, cls = interaction_block(P["interactions"][i], P["vit"]["blocks"][i],
                                       xt, c, cls, cfg["vit_heads"], cfg["deform_heads"],
                                       cin, bs)
        outs.append(xt)

    c2v = c[:, :n2].reshape(bs, H * 4, W * 4, D * 4, dim)
    c3v = c[:, n2:n2 + n3].reshape(bs, H * 2, W * 2, D * 2, dim)
    c4v = c[:, n2 + n3:].reshape(bs, H, W, D, dim)
    c1v = conv_transpose_up2_cl(c2v, P["up_w"], P["up_b"]) + c1

    def merge(t, w, b):
        t = t.reshape(bs, cin, H, W, D, dim).transpose(0, 2, 3, 4, 1, 5)
        t = t.reshape(bs, H, W, D, cin * dim)
        return conv1x1_cl(t, w, b)

    x1 = trilinear_cl(merge(outs[0], P["cm1_w"], P["cm1_b"]), (H * 8, W * 8, D * 8))
    x2 = trilinear_cl(merge(outs[1], P["cm2_w"], P["cm2_b"]), (H * 4, W * 4, D * 4))
    x3 = trilinear_cl(merge(outs[2], P["cm3_w"], P["cm3_b"]), (H * 2, W * 2, D * 2))
    x4 = merge(outs[3], P["cm4_w"], P["cm4_b"])
    c1v, c2v, c3v, c4v = c1v + x1, c2v + x2, c3v + x3, c4v + x4

    f1 = bn_cl(c1v, P["n1_w"], P["n1_b"])
    f2 = bn_cl(c2v, P["n2_w"], P["n2_b"])
    f3 = bn_cl(c3v, P["n3_w"], P["n3_b"])
    f4 = bn_cl(c4v, P["n4_w"], P["n4_b"])

    def to_ncdhw(t):
        return jnp.transpose(t, (0, 4, 1, 2, 3))

    return [to_ncdhw(f1), to_ncdhw(f2), to_ncdhw(f3), to_ncdhw(f4)]


# --------------------------------------------------------------------------------------
# Deterministic parameter initialization (synthetic; shapes per module __init__)
# --------------------------------------------------------------------------------------
class KeyGen:
    def __init__(self, seed=0):
        self.key = jax.random.PRNGKey(seed)

    def __call__(self):
        self.key, k = jax.random.split(self.key)
        return k


def init_params(seed, cfg):
    kg = KeyGen(seed)
    dim, cin, inpl, g = cfg["dim"], cfg["cin"], cfg["inplane"], cfg["pos_grid"]

    def trunc(shape, std=0.02):
        return std * jax.random.truncated_normal(kg(), -2.0, 2.0, shape, jnp.float32)

    def lin(kin, kout):
        return trunc((kin, kout)), jnp.zeros((kout,), jnp.float32)

    def conv(kin_total, cout, ksize):
        std = float(np.sqrt(2.0 / ((ksize ** 3) * cout)))
        return (std * jax.random.normal(kg(), (kin_total, cout), jnp.float32),
                jnp.zeros((cout,), jnp.float32))

    def ln():
        return jnp.ones((dim,), jnp.float32), jnp.zeros((dim,), jnp.float32)

    def xattn():
        qw, qb = lin(dim, dim); kw, kb = lin(dim, dim)
        vw, vb = lin(dim, dim); ow, ob = lin(dim, dim)
        return dict(q_w=qw, q_b=qb, k_w=kw, k_b=kb, v_w=vw, v_b=vb, o_w=ow, o_b=ob)

    def injector_p():
        lqw, lqb = ln(); lfw, lfb = ln()
        return dict(ln_q_w=lqw, ln_q_b=lqb, ln_f_w=lfw, ln_f_b=lfb, attn=xattn(),
                    gamma=cfg["init_values"] * jnp.ones((dim,), jnp.float32))

    def extractor_p():
        hid = max(1, int(dim * cfg["cffn_ratio"]))
        lqw, lqb = ln(); lfw, lfb = ln(); flw, flb = ln()
        f1w, f1b = lin(dim, hid); f2w, f2b = lin(hid, dim)
        return dict(ln_q_w=lqw, ln_q_b=lqb, ln_f_w=lfw, ln_f_b=lfb, attn=xattn(),
                    ffn_ln_w=flw, ffn_ln_b=flb,
                    ffn_fc1_w=f1w, ffn_fc1_b=f1b, ffn_fc2_w=f2w, ffn_fc2_b=f2b)

    def block_p():
        l1w, l1b = ln(); l2w, l2b = ln()
        qkvw, qkvb = lin(dim, 3 * dim)
        pw, pb = lin(dim, dim)
        f1w, f1b = lin(dim, cfg["mlp_ratio"] * dim)
        f2w, f2b = lin(cfg["mlp_ratio"] * dim, dim)
        return dict(ln1_w=l1w, ln1_b=l1b, qkv_w=qkvw, qkv_b=qkvb, proj_w=pw, proj_b=pb,
                    ln2_w=l2w, ln2_b=l2b, fc1_w=f1w, fc1_b=f1b, fc2_w=f2w, fc2_b=f2b)

    spm = {}
    spm["stem_w"], spm["stem_b"] = conv(cin * 8, inpl, 2)
    spm["bn1_w"], spm["bn1_b"] = jnp.ones((inpl,), jnp.float32), jnp.zeros((inpl,), jnp.float32)
    spm["conv2_w"], spm["conv2_b"] = conv(inpl * 8, 2 * inpl, 2)
    spm["bn2_w"], spm["bn2_b"] = jnp.ones((2 * inpl,), jnp.float32), jnp.zeros((2 * inpl,), jnp.float32)
    spm["conv3_w"], spm["conv3_b"] = conv(2 * inpl * 8, 4 * inpl, 2)
    spm["bn3_w"], spm["bn3_b"] = jnp.ones((4 * inpl,), jnp.float32), jnp.zeros((4 * inpl,), jnp.float32)
    spm["conv4_w"], spm["conv4_b"] = conv(4 * inpl * 8, 4 * inpl, 2)
    spm["bn4_w"], spm["bn4_b"] = jnp.ones((4 * inpl,), jnp.float32), jnp.zeros((4 * inpl,), jnp.float32)
    spm["fc1_w"], spm["fc1_b"] = conv(inpl, dim, 1)
    spm["fc2_w"], spm["fc2_b"] = conv(2 * inpl, dim, 1)
    spm["fc3_w"], spm["fc3_b"] = conv(4 * inpl, dim, 1)
    spm["fc4_w"], spm["fc4_b"] = conv(4 * inpl, dim, 1)

    vit = dict(
        patch_w=trunc((16 ** 3, dim)), patch_b=jnp.zeros((dim,), jnp.float32),
        pos_embed=trunc((1, 1 + g ** 3, dim)),
        cls_token=trunc((1, 1, dim)),
        blocks=[[block_p() for _ in range(cfg["blocks_per_chunk"])] for _ in range(4)],
    )

    interactions = []
    for i in range(4):
        interactions.append(dict(injector=injector_p(), extractor=extractor_p(),
                                 extra=[extractor_p(), extractor_p()] if i == 3 else []))

    up_w, _ = conv(dim, dim * 8, 2)
    up_b = jnp.zeros((dim,), jnp.float32)   # ConvTranspose3d bias is (out_channels,) == (dim,)

    P = dict(level_embed=jax.random.normal(kg(), (3, dim), jnp.float32),
             spm=spm, vit=vit, interactions=interactions, up_w=up_w, up_b=up_b)
    for i in range(1, 5):
        w, b_ = conv(cin * dim, dim, 1)
        P[f"cm{i}_w"], P[f"cm{i}_b"] = w, b_
        P[f"n{i}_w"] = jnp.ones((dim,), jnp.float32)
        P[f"n{i}_b"] = jnp.zeros((dim,), jnp.float32)
    return P


# --------------------------------------------------------------------------------------
if __name__ == "__main__":
    cfg = dict(dim=32, cin=2, inplane=16, pos_grid=7,       # pretrain_size=112 -> 112//16 = 7
               vit_heads=4, deform_heads=8, blocks_per_chunk=1,
               mlp_ratio=4, cffn_ratio=0.25, init_values=1e-6)

    key = jax.random.PRNGKey(0)
    x = jax.random.normal(key, (1, cfg["cin"], 32, 32, 32), jnp.float32)   # (bs, C_in, X, Y, Z)

    P = init_params(0, cfg)
    outs = vit_adapter_forward(P, x, cfg)
    outs = jax.block_until_ready(outs)

    expected = [(1, 32, 16, 16, 16), (1, 32, 8, 8, 8), (1, 32, 4, 4, 4), (1, 32, 2, 2, 2)]
    for f, shp in zip(outs, expected):
        assert f.shape == shp, (f.shape, shp)
        assert bool(jnp.all(jnp.isfinite(f)))
    print("KERNEL_OK")
</pallas_src>

<mosaic_0001>
module attributes {stable_mosaic.version = 11 : i64} {
  func.func @_mm_kernel(%arg0: i32, %arg1: i32, %arg2: i32, %arg3: memref<512x16xbf16, #tpu.memory_space<vmem>>, %arg4: memref<16x16xbf16, #tpu.memory_space<vmem>>, %arg5: memref<1x16xf32, #tpu.memory_space<vmem>>, %arg6: memref<512x16xf32, #tpu.memory_space<vmem>>, %arg7: memref<512x16xf32, #tpu.memory_space<vmem>>) attributes {dimension_semantics = [#tpu.dimension_semantics<parallel>, #tpu.dimension_semantics<parallel>, #tpu.dimension_semantics<arbitrary>], iteration_bounds = array<i64: 8, 1, 1>, scalar_prefetch = 0 : i64, scratch_operands = 1 : i64, tpu.core_type = #tpu.core_type<tc>, window_params = [{transform_indices = @transform_0, window_bounds = array<i64: 512, 16>}, {transform_indices = @transform_1, window_bounds = array<i64: 16, 16>}, {transform_indices = @transform_2, window_bounds = array<i64: 1, 16>}, {transform_indices = @transform_3, window_bounds = array<i64: 512, 16>}]} {
    %c0_i32 = arith.constant 0 : i32
    %0 = arith.cmpi eq, %arg2, %c0_i32 : i32
    %1 = arith.extui %0 : i1 to i32
    %c0_i32_0 = arith.constant 0 : i32
    %2 = arith.cmpi ne, %1, %c0_i32_0 : i32
    scf.if %2 {
      %cst_10 = arith.constant 0.000000e+00 : f32
      %12 = vector.broadcast %cst_10 : f32 to vector<512x16xf32>
      %c0_11 = arith.constant 0 : index
      %c0_12 = arith.constant 0 : index
      %13 = vector.load %arg7[%c0_11, %c0_12] : memref<512x16xf32, #tpu.memory_space<vmem>>, vector<512x16xf32>
      tpu.vector_store %arg7[%c0_11, %c0_12], %12 {strides = array<i32>} : memref<512x16xf32, #tpu.memory_space<vmem>>, vector<512x16xf32>,
    } else {
    }
    %c0 = arith.constant 0 : index
    %c0_1 = arith.constant 0 : index
    %3 = vector.load %arg7[%c0, %c0_1] : memref<512x16xf32, #tpu.memory_space<vmem>>, vector<512x16xf32>
    %c0_2 = arith.constant 0 : index
    %c0_3 = arith.constant 0 : index
    %4 = vector.load %arg3[%c0_2, %c0_3] : memref<512x16xbf16, #tpu.memory_space<vmem>>, vector<512x16xbf16>
    %c0_4 = arith.constant 0 : index
    %c0_5 = arith.constant 0 : index
    %5 = vector.load %arg4[%c0_4, %c0_5] : memref<16x16xbf16, #tpu.memory_space<vmem>>, vector<16x16xbf16>
    %cst = arith.constant dense<0.000000e+00> : vector<512x16xf32>
    %6 = tpu.matmul %4, %5, %cst {dimension_numbers = #tpu.dot_dimension_numbers<[1], [0], [0], [1], [0, 0, 1, 1], [], []>} : vector<512x16xbf16>, vector<16x16xbf16>, vector<512x16xf32> -> vector<512x16xf32>
    %7 = arith.addf %3, %6 : vector<512x16xf32>
    %c0_6 = arith.constant 0 : index
    %c0_7 = arith.constant 0 : index
    %8 = vector.load %arg7[%c0_6, %c0_7] : memref<512x16xf32, #tpu.memory_space<vmem>>, vector<512x16xf32>
    tpu.vector_store %arg7[%c0_6, %c0_7], %7 {strides = array<i32>} : memref<512x16xf32, #tpu.memory_space<vmem>>, vector<512x16xf32>,
    %c0_i32_8 = arith.constant 0 : i32
    %9 = arith.cmpi eq, %arg2, %c0_i32_8 : i32
    %10 = arith.extui %9 : i1 to i32
    %c0_i32_9 = arith.constant 0 : i32
    %11 = arith.cmpi ne, %10, %c0_i32_9 : i32
    scf.if %11 {
      %c0_10 = arith.constant 0 : index
      %c0_11 = arith.constant 0 : index
      %12 = vector.load %arg7[%c0_10, %c0_11] : memref<512x16xf32, #tpu.memory_space<vmem>>, vector<512x16xf32>
      %c0_12 = arith.constant 0 : index
      %c0_13 = arith.constant 0 : index
      %13 = vector.load %arg5[%c0_12, %c0_13] : memref<1x16xf32, #tpu.memory_space<vmem>>, vector<1x16xf32>
      %14 = vector.broadcast %13 : vector<1x16xf32> to vector<512x16xf32>
      %15 = arith.addf %12, %14 : vector<512x16xf32>
      %c0_14 = arith.constant 0 : index
      %c0_15 = arith.constant 0 : index
      %16 = vector.load %arg6[%c0_14, %c0_15] : memref<512x16xf32, #tpu.memory_space<vmem>>, vector<512x16xf32>
      tpu.vector_store %arg6[%c0_14, %c0_15], %15 {strides = array<i32>} : memref<512x16xf32, #tpu.memory_space<vmem>>, vector<512x16xf32>,
    } else {
    }
    return
  }
  func.func @transform_0(%arg0: i32, %arg1: i32, %arg2: i32) -> (i32, i32) {
    %c0_i32 = arith.constant 0 : i32
    return %arg0, %arg2 : i32, i32
  }
  func.func @transform_1(%arg0: i32, %arg1: i32, %arg2: i32) -> (i32, i32) {
    %c0_i32 = arith.constant 0 : i32
    return %arg2, %arg1 : i32, i32
  }
  func.func @transform_2(%arg0: i32, %arg1: i32, %arg2: i32) -> (i32, i32) {
    %c0_i32 = arith.constant 0 : i32
    %c0_i32_0 = arith.constant 0 : i32
    return %c0_i32, %arg1 : i32, i32
  }
  func.func @transform_3(%arg0: i32, %arg1: i32, %arg2: i32) -> (i32, i32) {
    %c0_i32 = arith.constant 0 : i32
    return %arg0, %arg1 : i32, i32
  }
}

</mosaic_0001>

<llo_original>
// kernel: _matmul_impl.1
$region0: #{_matmul_impl.1}
  #allocation0 [shape = 'u32[]', space=smem, size = 0x4, offset = 0x4, fixed_abs, tag = 'smem constant byte address 0x4 - core index']
  #allocation1 [shape = 'u32[144,128]{1,0:T(1,128)}', space=vmem, size = 0x12000, scoped, tag = 'internal scratch']
  #allocation2 [shape = 'f32[512,16]{1,0:T(8,128)}', space=vmem, size = 0x40000, scoped, tag = 'scratch operand']
  %s0 = inlined_call_operand.vmem [shape: bf16[4096,16], index: 0, kind: input, shape index: {}]
  %s1 = inlined_call_operand.vmem [shape: bf16[16,16], index: 1, kind: input, shape index: {}]
  %s2 = inlined_call_operand.hbm [shape: f32[1,16], index: 2, kind: input, shape index: {}]
  %s3 = inlined_call_operand.vmem [shape: f32[4096,16], index: 3, kind: output, shape index: {}]
  %s4 = sld [smem:[#allocation0]]
  $region57: #{_matmul_impl.1} parent=0
    _
  %s6 = ssub.s32 1, %s4
  %s7 = scalar_select 0, %s6, %s4
  $region1: #{_matmul_impl.1} parent=0
    #allocation3 [shape = 'u8[512]{0}', space=vmem, size = 0x400, scoped, tag = 'input window, operand 2, single buffered']
    #allocation4 [shape = 's32[2]{0}', space=sflag, size = 0x8, scoped, tag = 'scoped memory for _matmul_impl.1']
    %8 = vsyncpa [#allocation4], 0
    loop: start=0, step=1, limit=10
    $region2: #{_matmul_impl.1} parent=1 // loop_pre_header
      _
    $region3: #{_matmul_impl.1} parent=1 // loop_header
      %s10 = sphi 0, %s14
      %p11 = scmp.ge.s32.totalorder %s10, 10
      %s17 = sphi 0, %s36
      %s18 = sphi 0, %s32
      %s19 = sphi 0, %s28
      %s20 = sphi 0, %s17
      %s21 = sphi 0, %s18
      %s22 = sphi 0, %s19
      %s23 = sphi 0, %s20
      %s24 = sphi 0, %s21
      %s25 = sphi 0, %s22
      %s41 = sphi 0, %s43
      %s44 = sphi 0, %s41
      %s45 = sphi 0, %s44
      %s61 = sphi 0, %s45
      %s69 = sphi 0, %s71
      %s72 = sphi 0, %s69
      %s73 = sphi 0, %s72
      %s89 = sphi 0, %s73
      %s95 = sphi 0, %s97
      %s98 = sphi 0, %s95
      %s99 = sphi 0, %s98
      %s115 = sphi 0, %s99
      %s123 = sphi 0, %s125
      %s126 = sphi 0, %s123
      %s127 = sphi 0, %s126
      %s143 = sphi 0, %s127
    $region4: #{_matmul_impl.1} parent=1 // loop_header_branch
      %13 = sbr.rel (%p11) target = $region8
    $region5: #{_matmul_impl.1} parent=1 // loop_body
      %s15 = ssub.s32 %s10, 1
      %s16 = ssub.s32 %s10, 2
      %s26 = sadd.s32 1, %s19
      %p27 = scmp.ge.s32.totalorder %s26, 1
      %s28 = scalar_select %p27, 0, %s26
      %s29 = sadd.s32 1, %s18
      %s30 = scalar_select %p27, %s29, %s18
      %p31 = scmp.ge.s32.totalorder %s30, 1
      %s32 = scalar_select %p31, 0, %s30
      %s33 = sadd.s32 1, %s17
      %s34 = scalar_select %p31, %s33, %s17
      %p35 = scmp.ge.s32.totalorder %s34, 8
      %s36 = scalar_select %p35, 0, %s34
      %s37 = ssub.s32 %s17, %s36
      %s38 = ssub.s32 %s19, %s28
      %s39 = sor.u32 %s37, %s38
      %p40 = scmp.eq.s32.totalorder %s39, 0
      %s42 = sadd.s32 %s41, 1
      %s43 = scalar_select %p40, %s41, %s42
      %p46 = pneg %p40
      %p47 = scmp.eq.s32.totalorder %s10, 7
      %p48 = por %p46, %p47
      %p49 = scmp.ne.s32.totalorder %s41, %s44
      %p50 = scmp.eq.s32.totalorder %s10, 0
      %p51 = por %p49, %p50
      %p52 = scmp.ne.s32.totalorder %s41, %s44
      %p53 = scmp.eq.s32.totalorder %s15, 7
      %p54 = por %p52, %p53
      %p55 = scmp.ne.s32.totalorder %s44, %s45
      %p56 = scmp.eq.s32.totalorder %s15, 0
      %p57 = por %p55, %p56
      %p58 = scmp.ne.s32.totalorder %s44, %s45
      %p59 = scmp.eq.s32.totalorder %s16, 7
      %p60 = por %p58, %p59
      %p62 = scmp.ne.s32.totalorder %s45, %s61
      %p63 = scmp.eq.s32.totalorder %s16, 0
      %p64 = por %p62, %p63
      %s65 = ssub.s32 %s19, %s28
      %s66 = ssub.s32 %s18, %s32
      %s67 = sor.u32 %s65, %s66
      %p68 = scmp.eq.s32.totalorder %s67, 0
      %s70 = sadd.s32 %s69, 1
      %s71 = scalar_select %p68, %s69, %s70
      %p74 = pneg %p68
      %p75 = scmp.eq.s32.totalorder %s10, 7
      %p76 = por %p74, %p75
      %p77 = scmp.ne.s32.totalorder %s69, %s72
      %p78 = scmp.eq.s32.totalorder %s10, 0
      %p79 = por %p77, %p78
      %p80 = scmp.ne.s32.totalorder %s69, %s72
      %p81 = scmp.eq.s32.totalorder %s15, 7
      %p82 = por %p80, %p81
      %p83 = scmp.ne.s32.totalorder %s72, %s73
      %p84 = scmp.eq.s32.totalorder %s15, 0
      %p85 = por %p83, %p84
      %p86 = scmp.ne.s32.totalorder %s72, %s73
      %p87 = scmp.eq.s32.totalorder %s16, 7
      %p88 = por %p86, %p87
      %p90 = scmp.ne.s32.totalorder %s73, %s89
      %p91 = scmp.eq.s32.totalorder %s16, 0
      %p92 = por %p90, %p91
      %s93 = ssub.s32 %s18, %s32
      %p94 = scmp.eq.s32.totalorder %s93, 0
      %s96 = sadd.s32 %s95, 1
      %s97 = scalar_select %p94, %s95, %s96
      %p100 = pneg %p94
      %p101 = scmp.eq.s32.totalorder %s10, 7
      %p102 = por %p100, %p101
      %p103 = scmp.ne.s32.totalorder %s95, %s98
      %p104 = scmp.eq.s32.totalorder %s10, 0
      %p105 = por %p103, %p104
      %p106 = scmp.ne.s32.totalorder %s95, %s98
      %p107 = scmp.eq.s32.totalorder %s15, 7
      %p108 = por %p106, %p107
      %p109 = scmp.ne.s32.totalorder %s98, %s99
      %p110 = scmp.eq.s32.totalorder %s15, 0
      %p111 = por %p109, %p110
      %p112 = scmp.ne.s32.totalorder %s98, %s99
      %p113 = scmp.eq.s32.totalorder %s16, 7
      %p114 = por %p112, %p113
      %p116 = scmp.ne.s32.totalorder %s99, %s115
      %p117 = scmp.eq.s32.totalorder %s16, 0
      %p118 = por %p116, %p117
      %s119 = ssub.s32 %s17, %s36
      %s120 = ssub.s32 %s18, %s32
      %s121 = sor.u32 %s119, %s120
      %p122 = scmp.eq.s32.totalorder %s121, 0
      %s124 = sadd.s32 %s123, 1
      %s125 = scalar_select %p122, %s123, %s124
      %p128 = pneg %p122
      %p129 = scmp.eq.s32.totalorder %s10, 7
      %p130 = por %p128, %p129
      %p131 = scmp.ne.s32.totalorder %s123, %s126
      %p132 = scmp.eq.s32.totalorder %s10, 0
      %p133 = por %p131, %p132
      %p134 = scmp.ne.s32.totalorder %s123, %s126
      %p135 = scmp.eq.s32.totalorder %s15, 7
      %p136 = por %p134, %p135
      %p137 = scmp.ne.s32.totalorder %s126, %s127
      %p138 = scmp.eq.s32.totalorder %s15, 0
      %p139 = por %p137, %p138
      %p140 = scmp.ne.s32.totalorder %s126, %s127
      %p141 = scmp.eq.s32.totalorder %s16, 7
      %p142 = por %p140, %p141
      %p144 = scmp.ne.s32.totalorder %s127, %s143
      %p145 = scmp.eq.s32.totalorder %s16, 0
      %p146 = por %p144, %p145
      %p147 = scmp.le.s32.totalorder 1, %s10
      %p148 = scmp.lt.s32.totalorder %s10, 9
      %p149 = pnand %p147, %p148
      %p150 = pneg %p149
      // Predicated region
      $region9: #{_matmul_impl.1} parent=5 // pred_check
        _
      $region10: #{_matmul_impl.1} parent=5 // pred_check_branch
        %152 = sbr.rel (%p149) target = $region12
      $region11: #{_matmul_impl.1} parent=5 // pred_region
        %s153 = ssub.s32 %s10, 1
        // Predicated region
        $region13: #{_matmul_impl.1} parent=11 // pred_check
          %p154 = pneg %p85
        $region14: #{_matmul_impl.1} parent=11 // pred_check_branch
          %156 = sbr.rel (%p154) target = $region16
        $region15: #{_matmul_impl.1} parent=11 // pred_region
          %s157 = smul.u32 2, %s22
          %p158 = scmp.lt.s32.totalorder %s157, 1
          %s159 = scalar_select %p158, %s157, 1
          %p160 = scmp.lt.s32.totalorder %s21, 0
          %s161 = scalar_select %p160, %s21, 0
          %s162 = sadd.s32 %s161, %s159
          %s163 = smul.addr %s162, 4
          %s164 = scalar_lea.vmem %s1, %s163
          %s165 = smul.u32 2, %s22
        $region16: #{_matmul_impl.1} parent=11 // pred_fallthru
          _
        // Predicated region
        $region17: #{_matmul_impl.1} parent=11 // pred_check
          %p166 = pneg %p111
        $region18: #{_matmul_impl.1} parent=11 // pred_check_branch
          %168 = sbr.rel (%p166) target = $region20
        $region19: #{_matmul_impl.1} parent=11 // pred_region
          %s170 = ssub.s32 16, 16
          %171 = vsyncadd [#allocation4], %s170
          %s172 = smul.addr %s21, 16
          %s173 = scalar_lea.hbm %s2, %s172
          %s175 = sshll.u32 [#allocation3], 4
          %s176 = int_to_ptr.vmem [resolvable:$true] %s175
          %178 = dma.hbm_to_vmem [thread:$0]  %s173, 16, %s176, [#allocation4]
        $region20: #{_matmul_impl.1} parent=11 // pred_fallthru
          _
      $region12: #{_matmul_impl.1} parent=5 // pred_fallthru
        _
      %p179 = scmp.lt.s32.totalorder %s10, 8
      // Predicated region
      $region21: #{_matmul_impl.1} parent=5 // pred_check
        %p180 = pneg %p179
      $region22: #{_matmul_impl.1} parent=5 // pred_check_branch
        %182 = sbr.rel (%p180) target = $region24
      $region23: #{_matmul_impl.1} parent=5 // pred_region
        // Predicated region
        $region25: #{_matmul_impl.1} parent=23 // pred_check
          %p183 = pneg %p51
        $region26: #{_matmul_impl.1} parent=23 // pred_check_branch
          %185 = sbr.rel (%p183) target = $region28
        $region27: #{_matmul_impl.1} parent=23 // pred_region
          %s186 = smul.u32 64, %s17
          %p187 = scmp.lt.s32.totalorder %s186, 511
          %s188 = scalar_select %p187, %s186, 511
          %p189 = scmp.lt.s32.totalorder %s19, 0
          %s190 = scalar_select %p189, %s19, 0
          %s191 = sadd.s32 %s190, %s188
          %s192 = smul.addr %s191, 4
          %s193 = scalar_lea.vmem %s0, %s192
          %s194 = smul.u32 64, %s17
        $region28: #{_matmul_impl.1} parent=23 // pred_fallthru
          _
      $region24: #{_matmul_impl.1} parent=5 // pred_fallthru
        _
      %p195 = scmp.le.s32.totalorder 1, %s10
      %p196 = scmp.lt.s32.totalorder %s10, 9
      %p197 = pnand %p195, %p196
      %p198 = pneg %p197
      // Predicated region
      $region29: #{_matmul_impl.1} parent=5 // pred_check
        _
      $region30: #{_matmul_impl.1} parent=5 // pred_check_branch
        %200 = sbr.rel (%p197) target = $region32
      $region31: #{_matmul_impl.1} parent=5 // pred_region
        %s201 = ssub.s32 %s10, 1
        // Predicated region
        $region33: #{_matmul_impl.1} parent=31 // pred_check
          %p202 = pneg %p111
        $region34: #{_matmul_impl.1} parent=31 // pred_check_branch
          %204 = sbr.rel (%p202) target = $region36
        $region35: #{_matmul_impl.1} parent=31 // pred_region
          %205 = dma.done [#allocation4], 16
        $region36: #{_matmul_impl.1} parent=31 // pred_fallthru
          _
        %s206 = smul.u32 64, %s20
        %p207 = scmp.lt.s32.totalorder %s206, 511
        %s208 = scalar_select %p207, %s206, 511
        %p209 = scmp.lt.s32.totalorder %s22, 0
        %s210 = scalar_select %p209, %s22, 0
        %s211 = sadd.s32 %s210, %s208
        %s212 = smul.addr %s211, 4
        %s213 = scalar_lea.vmem %s0, %s212
        %p214 = pneg %p57
        %p215 = pneg %p54
        %s216 = smul.u32 2, %s22
        %p217 = scmp.lt.s32.totalorder %s216, 1
        %s218 = scalar_select %p217, %s216, 1
        %p219 = scmp.lt.s32.totalorder %s21, 0
        %s220 = scalar_select %p219, %s21, 0
        %s221 = sadd.s32 %s220, %s218
        %s222 = smul.addr %s221, 4
        %s223 = scalar_lea.vmem %s1, %s222
        %p224 = pneg %p85
        %p225 = pneg %p82
        %p226 = pneg %p111
        %p227 = pneg %p108
        %p228 = pneg %p139
        %p229 = pneg %p136
        %s230 = smul.u32 64, %s20
        %p231 = scmp.lt.s32.totalorder %s230, 511
        %s232 = scalar_select %p231, %s230, 511
        %p233 = scmp.lt.s32.totalorder %s21, 0
        %s234 = scalar_select %p233, %s21, 0
        %s235 = sadd.s32 %s234, %s232
        %s236 = smul.addr %s235, 8
        %s237 = scalar_lea.vmem %s3, %s236
        %s238 = smul.u32 64, %s20
        %p239 = scmp.lt.s32.totalorder %s238, 511
        %s240 = scalar_select %p239, %s238, 511
        %p241 = scmp.lt.s32.totalorder %s22, 0
        %s242 = scalar_select %p241, %s22, 0
        %s243 = sadd.s32 %s242, %s240
        %s244 = smul.addr %s243, 4
        %s245 = scalar_lea.vmem %s0, %s244
        %s246 = smul.u32 64, %s20
        %s247 = smul.u32 2, %s22
        %p248 = scmp.lt.s32.totalorder %s247, 1
        %s249 = scalar_select %p248, %s247, 1
        %p250 = scmp.lt.s32.totalorder %s21, 0
        %s251 = scalar_select %p250, %s21, 0
        %s252 = sadd.s32 %s251, %s249
        %s253 = smul.addr %s252, 4
        %s254 = scalar_lea.vmem %s1, %s253
        %s255 = smul.u32 2, %s22
        %s256 = smul.u32 64, %s20
        %p257 = scmp.lt.s32.totalorder %s256, 511
        %s258 = scalar_select %p257, %s256, 511
        %p259 = scmp.lt.s32.totalorder %s21, 0
        %s260 = scalar_select %p259, %s21, 0
        %s261 = sadd.s32 %s260, %s258
        %s262 = smul.addr %s261, 8
        %s263 = scalar_lea.vmem %s3, %s262
        %s264 = smul.u32 64, %s20
        %p266 = scmp.eq.s32.totalorder %s22, 0
        // Predicated region
        $region37: #{_matmul_impl.1} parent=31 // pred_check
          %p267 = pneg %p266
        $region38: #{_matmul_impl.1} parent=31 // pred_check_branch
          %269 = sbr.rel (%p267) target = $region40
        $region39: #{_matmul_impl.1} parent=31 // pred_region
          %vm270 = vcmask 130048
          %271 = vst.msk [vmem:[#allocation2] sm:$0xff] %vm270, 0.0
          %272 = vst.msk [vmem:[#allocation2 + $0x8] sm:$0xff] %vm270, 0.0
          %273 = vst.msk [vmem:[#allocation2 + $0x10] sm:$0xff] %vm270, 0.0
          %274 = vst.msk [vmem:[#allocation2 + $0x18] sm:$0xff] %vm270, 0.0
          %275 = vst.msk [vmem:[#allocation2 + $0x20] sm:$0xff] %vm270, 0.0
          %276 = vst.msk [vmem:[#allocation2 + $0x28] sm:$0xff] %vm270, 0.0
          %277 = vst.msk [vmem:[#allocation2 + $0x30] sm:$0xff] %vm270, 0.0
          %278 = vst.msk [vmem:[#allocation2 + $0x38] sm:$0xff] %vm270, 0.0
          %279 = vst.msk [vmem:[#allocation2 + $0x40] sm:$0xff] %vm270, 0.0
          %280 = vst.msk [vmem:[#allocation2 + $0x48] sm:$0xff] %vm270, 0.0
          %281 = vst.msk [vmem:[#allocation2 + $0x50] sm:$0xff] %vm270, 0.0
          %282 = vst.msk [vmem:[#allocation2 + $0x58] sm:$0xff] %vm270, 0.0
          %283 = vst.msk [vmem:[#allocation2 + $0x60] sm:$0xff] %vm270, 0.0
          %284 = vst.msk [vmem:[#allocation2 + $0x68] sm:$0xff] %vm270, 0.0
          %285 = vst.msk [vmem:[#allocation2 + $0x70] sm:$0xff] %vm270, 0.0
          %286 = vst.msk [vmem:[#allocation2 + $0x78] sm:$0xff] %vm270, 0.0
          %287 = vst.msk [vmem:[#allocation2 + $0x80] sm:$0xff] %vm270, 0.0
          %288 = vst.msk [vmem:[#allocation2 + $0x88] sm:$0xff] %vm270, 0.0
          %289 = vst.msk [vmem:[#allocation2 + $0x90] sm:$0xff] %vm270, 0.0
          %290 = vst.msk [vmem:[#allocation2 + $0x98] sm:$0xff] %vm270, 0.0
          %291 = vst.msk [vmem:[#allocation2 + $0xa0] sm:$0xff] %vm270, 0.0
          %292 = vst.msk [vmem:[#allocation2 + $0xa8] sm:$0xff] %vm270, 0.0
          %293 = vst.msk [vmem:[#allocation2 + $0xb0] sm:$0xff] %vm270, 0.0
          %294 = vst.msk [vmem:[#allocation2 + $0xb8] sm:$0xff] %vm270, 0.0
          %295 = vst.msk [vmem:[#allocation2 + $0xc0] sm:$0xff] %vm270, 0.0
          %296 = vst.msk [vmem:[#allocation2 + $0xc8] sm:$0xff] %vm270, 0.0
          %297 = vst.msk [vmem:[#allocation2 + $0xd0] sm:$0xff] %vm270, 0.0
          %298 = vst.msk [vmem:[#allocation2 + $0xd8] sm:$0xff] %vm270, 0.0
          %299 = vst.msk [vmem:[#allocation2 + $0xe0] sm:$0xff] %vm270, 0.0
          %300 = vst.msk [vmem:[#allocation2 + $0xe8] sm:$0xff] %vm270, 0.0
          %301 = vst.msk [vmem:[#allocation2 + $0xf0] sm:$0xff] %vm270, 0.0
          %302 = vst.msk [vmem:[#allocation2 + $0xf8] sm:$0xff] %vm270, 0.0
          %303 = vst.msk [vmem:[#allocation2 + $0x100] sm:$0xff] %vm270, 0.0
          %304 = vst.msk [vmem:[#allocation2 + $0x108] sm:$0xff] %vm270, 0.0
          %305 = vst.msk [vmem:[#allocation2 + $0x110] sm:$0xff] %vm270, 0.0
          %306 = vst.msk [vmem:[#allocation2 + $0x118] sm:$0xff] %vm270, 0.0
          %307 = vst.msk [vmem:[#allocation2 + $0x120] sm:$0xff] %vm270, 0.0
          %308 = vst.msk [vmem:[#allocation2 + $0x128] sm:$0xff] %vm270, 0.0
          %309 = vst.msk [vmem:[#allocation2 + $0x130] sm:$0xff] %vm270, 0.0
          %310 = vst.msk [vmem:[#allocation2 + $0x138] sm:$0xff] %vm270, 0.0
          %311 = vst.msk [vmem:[#allocation2 + $0x140] sm:$0xff] %vm270, 0.0
          %312 = vst.msk [vmem:[#allocation2 + $0x148] sm:$0xff] %vm270, 0.0
          %313 = vst.msk [vmem:[#allocation2 + $0x150] sm:$0xff] %vm270, 0.0
          %314 = vst.msk [vmem:[#allocation2 + $0x158] sm:$0xff] %vm270, 0.0
          %315 = vst.msk [vmem:[#allocation2 + $0x160] sm:$0xff] %vm270, 0.0
          %316 = vst.msk [vmem:[#allocation2 + $0x168] sm:$0xff] %vm270, 0.0
          %317 = vst.msk [vmem:[#allocation2 + $0x170] sm:$0xff] %vm270, 0.0
          %318 = vst.msk [vmem:[#allocation2 + $0x178] sm:$0xff] %vm270, 0.0
          %319 = vst.msk [vmem:[#allocation2 + $0x180] sm:$0xff] %vm270, 0.0
          %320 = vst.msk [vmem:[#allocation2 + $0x188] sm:$0xff] %vm270, 0.0
          %321 = vst.msk [vmem:[#allocation2 + $0x190] sm:$0xff] %vm270, 0.0
          %322 = vst.msk [vmem:[#allocation2 + $0x198] sm:$0xff] %vm270, 0.0
          %323 = vst.msk [vmem:[#allocation2 + $0x1a0] sm:$0xff] %vm270, 0.0
          %324 = vst.msk [vmem:[#allocation2 + $0x1a8] sm:$0xff] %vm270, 0.0
          %325 = vst.msk [vmem:[#allocation2 + $0x1b0] sm:$0xff] %vm270, 0.0
          %326 = vst.msk [vmem:[#allocation2 + $0x1b8] sm:$0xff] %vm270, 0.0
          %327 = vst.msk [vmem:[#allocation2 + $0x1c0] sm:$0xff] %vm270, 0.0
          %328 = vst.msk [vmem:[#allocation2 + $0x1c8] sm:$0xff] %vm270, 0.0
          %329 = vst.msk [vmem:[#allocation2 + $0x1d0] sm:$0xff] %vm270, 0.0
          %330 = vst.msk [vmem:[#allocation2 + $0x1d8] sm:$0xff] %vm270, 0.0
          %331 = vst.msk [vmem:[#allocation2 + $0x1e0] sm:$0xff] %vm270, 0.0
          %332 = vst.msk [vmem:[#allocation2 + $0x1e8] sm:$0xff] %vm270, 0.0
          %333 = vst.msk [vmem:[#allocation2 + $0x1f0] sm:$0xff] %vm270, 0.0
          %334 = vst.msk [vmem:[#allocation2 + $0x1f8] sm:$0xff] %vm270, 0.0
        $region40: #{_matmul_impl.1} parent=31 // pred_fallthru
          _
        %v335 = vld [vmem:[#allocation2] sm:$0xff]
        %v336 = vld [vmem:[#allocation2 + $0x8] sm:$0xff]
        %v337 = vld [vmem:[#allocation2 + $0x10] sm:$0xff]
        %v338 = vld [vmem:[#allocation2 + $0x18] sm:$0xff]
        %v339 = vld [vmem:[#allocation2 + $0x20] sm:$0xff]
        %v340 = vld [vmem:[#allocation2 + $0x28] sm:$0xff]
        %v341 = vld [vmem:[#allocation2 + $0x30] sm:$0xff]
        %v342 = vld [vmem:[#allocation2 + $0x38] sm:$0xff]
        %v343 = vld [vmem:[#allocation2 + $0x40] sm:$0xff]
        %v344 = vld [vmem:[#allocation2 + $0x48] sm:$0xff]
        %v345 = vld [vmem:[#allocation2 + $0x50] sm:$0xff]
        %v346 = vld [vmem:[#allocation2 + $0x58] sm:$0xff]
        %v347 = vld [vmem:[#allocation2 + $0x60] sm:$0xff]
        %v348 = vld [vmem:[#allocation2 + $0x68] sm:$0xff]
        %v349 = vld [vmem:[#allocation2 + $0x70] sm:$0xff]
        %v350 = vld [vmem:[#allocation2 + $0x78] sm:$0xff]
        %v351 = vld [vmem:[#allocation2 + $0x80] sm:$0xff]
        %v352 = vld [vmem:[#allocation2 + $0x88] sm:$0xff]
        %v353 = vld [vmem:[#allocation2 + $0x90] sm:$0xff]
        %v354 = vld [vmem:[#allocation2 + $0x98] sm:$0xff]
        %v355 = vld [vmem:[#allocation2 + $0xa0] sm:$0xff]
        %v356 = vld [vmem:[#allocation2 + $0xa8] sm:$0xff]
        %v357 = vld [vmem:[#allocation2 + $0xb0] sm:$0xff]
        %v358 = vld [vmem:[#allocation2 + $0xb8] sm:$0xff]
        %v359 = vld [vmem:[#allocation2 + $0xc0] sm:$0xff]
        %v360 = vld [vmem:[#allocation2 + $0xc8] sm:$0xff]
        %v361 = vld [vmem:[#allocation2 + $0xd0] sm:$0xff]
        %v362 = vld [vmem:[#allocation2 + $0xd8] sm:$0xff]
        %v363 = vld [vmem:[#allocation2 + $0xe0] sm:$0xff]
        %v364 = vld [vmem:[#allocation2 + $0xe8] sm:$0xff]
        %v365 = vld [vmem:[#allocation2 + $0xf0] sm:$0xff]
        %v366 = vld [vmem:[#allocation2 + $0xf8] sm:$0xff]
        %v367 = vld [vmem:[#allocation2 + $0x100] sm:$0xff]
        %v368 = vld [vmem:[#allocation2 + $0x108] sm:$0xff]
        %v369 = vld [vmem:[#allocation2 + $0x110] sm:$0xff]
        %v370 = vld [vmem:[#allocation2 + $0x118] sm:$0xff]
        %v371 = vld [vmem:[#allocation2 + $0x120] sm:$0xff]
        %v372 = vld [vmem:[#allocation2 + $0x128] sm:$0xff]
        %v373 = vld [vmem:[#allocation2 + $0x130] sm:$0xff]
        %v374 = vld [vmem:[#allocation2 + $0x138] sm:$0xff]
        %v375 = vld [vmem:[#allocation2 + $0x140] sm:$0xff]
        %v376 = vld [vmem:[#allocation2 + $0x148] sm:$0xff]
        %v377 = vld [vmem:[#allocation2 + $0x150] sm:$0xff]
        %v378 = vld [vmem:[#allocation2 + $0x158] sm:$0xff]
        %v379 = vld [vmem:[#allocation2 + $0x160] sm:$0xff]
        %v380 = vld [vmem:[#allocation2 + $0x168] sm:$0xff]
        %v381 = vld [vmem:[#allocation2 + $0x170] sm:$0xff]
        %v382 = vld [vmem:[#allocation2 + $0x178] sm:$0xff]
        %v383 = vld [vmem:[#allocation2 + $0x180] sm:$0xff]
        %v384 = vld [vmem:[#allocation2 + $0x188] sm:$0xff]
        %v385 = vld [vmem:[#allocation2 + $0x190] sm:$0xff]
        %v386 = vld [vmem:[#allocation2 + $0x198] sm:$0xff]
        %v387 = vld [vmem:[#allocation2 + $0x1a0] sm:$0xff]
        %v388 = vld [vmem:[#allocation2 + $0x1a8] sm:$0xff]
        %v389 = vld [vmem:[#allocation2 + $0x1b0] sm:$0xff]
        %v390 = vld [vmem:[#allocation2 + $0x1b8] sm:$0xff]
        %v391 = vld [vmem:[#allocation2 + $0x1c0] sm:$0xff]
        %v392 = vld [vmem:[#allocation2 + $0x1c8] sm:$0xff]
        %v393 = vld [vmem:[#allocation2 + $0x1d0] sm:$0xff]
        %v394 = vld [vmem:[#allocation2 + $0x1d8] sm:$0xff]
        %v395 = vld [vmem:[#allocation2 + $0x1e0] sm:$0xff]
        %v396 = vld [vmem:[#allocation2 + $0x1e8] sm:$0xff]
        %v397 = vld [vmem:[#allocation2 + $0x1f0] sm:$0xff]
        %v398 = vld [vmem:[#allocation2 + $0x1f8] sm:$0xff]
        %v399 = vld [vmem:[%s245] sm:$0xf]
        %v400 = vld [vmem:[%s245 + $0x4] sm:$0xf]
        %v401 = vld [vmem:[%s245 + $0x8] sm:$0xf]
        %v402 = vld [vmem:[%s245 + $0xc] sm:$0xf]
        %v403 = vld [vmem:[%s245 + $0x10] sm:$0xf]
        %v404 = vld [vmem:[%s245 + $0x14] sm:$0xf]
        %v405 = vld [vmem:[%s245 + $0x18] sm:$0xf]
        %v406 = vld [vmem:[%s245 + $0x1c] sm:$0xf]
        %v407 = vld [vmem:[%s245 + $0x20] sm:$0xf]
        %v408 = vld [vmem:[%s245 + $0x24] sm:$0xf]
        %v409 = vld [vmem:[%s245 + $0x28] sm:$0xf]
        %v410 = vld [vmem:[%s245 + $0x2c] sm:$0xf]
        %v411 = vld [vmem:[%s245 + $0x30] sm:$0xf]
        %v412 = vld [vmem:[%s245 + $0x34] sm:$0xf]
        %v413 = vld [vmem:[%s245 + $0x38] sm:$0xf]
        %v414 = vld [vmem:[%s245 + $0x3c] sm:$0xf]
        %v415 = vld [vmem:[%s245 + $0x40] sm:$0xf]
        %v416 = vld [vmem:[%s245 + $0x44] sm:$0xf]
        %v417 = vld [vmem:[%s245 + $0x48] sm:$0xf]
        %v418 = vld [vmem:[%s245 + $0x4c] sm:$0xf]
        %v419 = vld [vmem:[%s245 + $0x50] sm:$0xf]
        %v420 = vld [vmem:[%s245 + $0x54] sm:$0xf]
        %v421 = vld [vmem:[%s245 + $0x58] sm:$0xf]
        %v422 = vld [vmem:[%s245 + $0x5c] sm:$0xf]
        %v423 = vld [vmem:[%s245 + $0x60] sm:$0xf]
        %v424 = vld [vmem:[%s245 + $0x64] sm:$0xf]
        %v425 = vld [vmem:[%s245 + $0x68] sm:$0xf]
        %v426 = vld [vmem:[%s245 + $0x6c] sm:$0xf]
        %v427 = vld [vmem:[%s245 + $0x70] sm:$0xf]
        %v428 = vld [vmem:[%s245 + $0x74] sm:$0xf]
        %v429 = vld [vmem:[%s245 + $0x78] sm:$0xf]
        %v430 = vld [vmem:[%s245 + $0x7c] sm:$0xf]
        %v431 = vld [vmem:[%s245 + $0x80] sm:$0xf]
        %v432 = vld [vmem:[%s245 + $0x84] sm:$0xf]
        %v433 = vld [vmem:[%s245 + $0x88] sm:$0xf]
        %v434 = vld [vmem:[%s245 + $0x8c] sm:$0xf]
        %v435 = vld [vmem:[%s245 + $0x90] sm:$0xf]
        %v436 = vld [vmem:[%s245 + $0x94] sm:$0xf]
        %v437 = vld [vmem:[%s245 + $0x98] sm:$0xf]
        %v438 = vld [vmem:[%s245 + $0x9c] sm:$0xf]
        %v439 = vld [vmem:[%s245 + $0xa0] sm:$0xf]
        %v440 = vld [vmem:[%s245 + $0xa4] sm:$0xf]
        %v441 = vld [vmem:[%s245 + $0xa8] sm:$0xf]
        %v442 = vld [vmem:[%s245 + $0xac] sm:$0xf]
        %v443 = vld [vmem:[%s245 + $0xb0] sm:$0xf]
        %v444 = vld [vmem:[%s245 + $0xb4] sm:$0xf]
        %v445 = vld [vmem:[%s245 + $0xb8] sm:$0xf]
        %v446 = vld [vmem:[%s245 + $0xbc] sm:$0xf]
        %v447 = vld [vmem:[%s245 + $0xc0] sm:$0xf]
        %v448 = vld [vmem:[%s245 + $0xc4] sm:$0xf]
        %v449 = vld [vmem:[%s245 + $0xc8] sm:$0xf]
        %v450 = vld [vmem:[%s245 + $0xcc] sm:$0xf]
        %v451 = vld [vmem:[%s245 + $0xd0] sm:$0xf]
        %v452 = vld [vmem:[%s245 + $0xd4] sm:$0xf]
        %v453 = vld [vmem:[%s245 + $0xd8] sm:$0xf]
        %v454 = vld [vmem:[%s245 + $0xdc] sm:$0xf]
        %v455 = vld [vmem:[%s245 + $0xe0] sm:$0xf]
        %v456 = vld [vmem:[%s245 + $0xe4] sm:$0xf]
        %v457 = vld [vmem:[%s245 + $0xe8] sm:$0xf]
        %v458 = vld [vmem:[%s245 + $0xec] sm:$0xf]
        %v459 = vld [vmem:[%s245 + $0xf0] sm:$0xf]
        %v460 = vld [vmem:[%s245 + $0xf4] sm:$0xf]
        %v461 = vld [vmem:[%s245 + $0xf8] sm:$0xf]
        %v462 = vld [vmem:[%s245 + $0xfc] sm:$0xf]
        %v463 = vld [vmem:[%s254] sm:$0xf]
        %v464 = vld [vmem:[%s254 + $0x4] sm:$0xf]
        %v529 = vunpack.c.l.b16 %v399
        %v530 = vunpack.c.l.b16 %v400
        %v531 = vunpack.c.l.b16 %v401
        %v532 = vunpack.c.l.b16 %v402
        %v533 = vunpack.c.l.b16 %v403
        %v534 = vunpack.c.l.b16 %v404
        %v535 = vunpack.c.l.b16 %v405
        %v536 = vunpack.c.l.b16 %v406
        %v537 = vunpack.c.l.b16 %v407
        %v538 = vunpack.c.l.b16 %v408
        %v539 = vunpack.c.l.b16 %v409
        %v540 = vunpack.c.l.b16 %v410
        %v541 = vunpack.c.l.b16 %v411
        %v542 = vunpack.c.l.b16 %v412
        %v543 = vunpack.c.l.b16 %v413
        %v544 = vunpack.c.l.b16 %v414
        %v545 = vunpack.c.l.b16 %v415
        %v546 = vunpack.c.l.b16 %v416
        %v547 = vunpack.c.l.b16 %v417
        %v548 = vunpack.c.l.b16 %v418
        %v549 = vunpack.c.l.b16 %v419
        %v550 = vunpack.c.l.b16 %v420
        %v551 = vunpack.c.l.b16 %v421
        %v552 = vunpack.c.l.b16 %v422
        %v553 = vunpack.c.l.b16 %v423
        %v554 = vunpack.c.l.b16 %v424
        %v555 = vunpack.c.l.b16 %v425
        %v556 = vunpack.c.l.b16 %v426
        %v557 = vunpack.c.l.b16 %v427
        %v558 = vunpack.c.l.b16 %v428
        %v559 = vunpack.c.l.b16 %v429
        %v560 = vunpack.c.l.b16 %v430
        %v561 = vunpack.c.l.b16 %v431
        %v562 = vunpack.c.l.b16 %v432
        %v563 = vunpack.c.l.b16 %v433
        %v564 = vunpack.c.l.b16 %v434
        %v565 = vunpack.c.l.b16 %v435
        %v566 = vunpack.c.l.b16 %v436
        %v567 = vunpack.c.l.b16 %v437
        %v568 = vunpack.c.l.b16 %v438
        %v569 = vunpack.c.l.b16 %v439
        %v570 = vunpack.c.l.b16 %v440
        %v571 = vunpack.c.l.b16 %v441
        %v572 = vunpack.c.l.b16 %v442
        %v573 = vunpack.c.l.b16 %v443
        %v574 = vunpack.c.l.b16 %v444
        %v575 = vunpack.c.l.b16 %v445
        %v576 = vunpack.c.l.b16 %v446
        %v577 = vunpack.c.l.b16 %v447
        %v578 = vunpack.c.l.b16 %v448
        %v579 = vunpack.c.l.b16 %v449
        %v580 = vunpack.c.l.b16 %v450
        %v581 = vunpack.c.l.b16 %v451
        %v582 = vunpack.c.l.b16 %v452
        %v583 = vunpack.c.l.b16 %v453
        %v584 = vunpack.c.l.b16 %v454
        %v585 = vunpack.c.l.b16 %v455
        %v586 = vunpack.c.l.b16 %v456
        %v587 = vunpack.c.l.b16 %v457
        %v588 = vunpack.c.l.b16 %v458
        %v589 = vunpack.c.l.b16 %v459
        %v590 = vunpack.c.l.b16 %v460
        %v591 = vunpack.c.l.b16 %v461
        %v592 = vunpack.c.l.b16 %v462
        %v593 = vpack.c.b16 %v530, %v529
        %v594 = vpack.c.b16 %v532, %v531
        %v595 = vpack.c.b16 %v534, %v533
        %v596 = vpack.c.b16 %v536, %v535
        %v597 = vpack.c.b16 %v538, %v537
        %v598 = vpack.c.b16 %v540, %v539
        %v599 = vpack.c.b16 %v542, %v541
        %v600 = vpack.c.b16 %v544, %v543
        %v601 = vpack.c.b16 %v546, %v545
        %v602 = vpack.c.b16 %v548, %v547
        %v603 = vpack.c.b16 %v550, %v549
        %v604 = vpack.c.b16 %v552, %v551
        %v605 = vpack.c.b16 %v554, %v553
        %v606 = vpack.c.b16 %v556, %v555
        %v607 = vpack.c.b16 %v558, %v557
        %v608 = vpack.c.b16 %v560, %v559
        %v609 = vpack.c.b16 %v562, %v561
        %v610 = vpack.c.b16 %v564, %v563
        %v611 = vpack.c.b16 %v566, %v565
        %v612 = vpack.c.b16 %v568, %v567
        %v613 = vpack.c.b16 %v570, %v569
        %v614 = vpack.c.b16 %v572, %v571
        %v615 = vpack.c.b16 %v574, %v573
        %v616 = vpack.c.b16 %v576, %v575
        %v617 = vpack.c.b16 %v578, %v577
        %v618 = vpack.c.b16 %v580, %v579
        %v619 = vpack.c.b16 %v582, %v581
        %v620 = vpack.c.b16 %v584, %v583
        %v621 = vpack.c.b16 %v586, %v585
        %v622 = vpack.c.b16 %v588, %v587
        %v623 = vpack.c.b16 %v590, %v589
        %v624 = vpack.c.b16 %v592, %v591
        %v627 = vunpack.c.l.b16 %v463
        %v628 = vunpack.c.l.b16 %v464
        %v629 = vpack.c.b16 %v628, %v627
        %vm631 = vcmask 130048
        %v633 = vsel %vm631, %v593, 0
        %v636 = vsel %vm631, %v594, 0
        %v639 = vsel %vm631, %v595, 0
        %v642 = vsel %vm631, %v596, 0
        %v645 = vsel %vm631, %v597, 0
        %v648 = vsel %vm631, %v598, 0
        %v651 = vsel %vm631, %v599, 0
        %v654 = vsel %vm631, %v600, 0
        %v657 = vsel %vm631, %v601, 0
        %v660 = vsel %vm631, %v602, 0
        %v663 = vsel %vm631, %v603, 0
        %v666 = vsel %vm631, %v604, 0
        %v669 = vsel %vm631, %v605, 0
        %v672 = vsel %vm631, %v606, 0
        %v675 = vsel %vm631, %v607, 0
        %v678 = vsel %vm631, %v608, 0
        %v681 = vsel %vm631, %v609, 0
        %v684 = vsel %vm631, %v610, 0
        %v687 = vsel %vm631, %v611, 0
        %v690 = vsel %vm631, %v612, 0
        %v693 = vsel %vm631, %v613, 0
        %v696 = vsel %vm631, %v614, 0
        %v699 = vsel %vm631, %v615, 0
        %v702 = vsel %vm631, %v616, 0
        %v705 = vsel %vm631, %v617, 0
        %v708 = vsel %vm631, %v618, 0
        %v711 = vsel %vm631, %v619, 0
        %v714 = vsel %vm631, %v620, 0
        %v717 = vsel %vm631, %v621, 0
        %v720 = vsel %vm631, %v622, 0
        %v723 = vsel %vm631, %v623, 0
        %v726 = vsel %vm631, %v624, 0
        %728 = vmatprep.subr.bf16.mxu0 0
        %729 = vmatpush1.bf16.msra.mxu0 %v629
        %730 = vmatprep.subr.bf16.mxu0 0
        %731 = vmatpush1.bf16.msra.mxu0 0
        %732 = vmatprep.subr.bf16.mxu0 0
        %733 = vmatpush1.bf16.msra.mxu0 0
        %734 = vmatprep.subr.bf16.mxu0 0
        %735 = vmatpush1.bf16.msra.mxu0 0
        %736 = vmatprep.subr.bf16.mxu0 0
        %737 = vmatpush1.bf16.msra.mxu0 0
        %738 = vmatprep.subr.bf16.mxu0 0
        %739 = vmatpush1.bf16.msra.mxu0 0
        %740 = vmatprep.subr.bf16.mxu0 0
        %741 = vmatpush1.bf16.msra.mxu0 0
        %742 = vmatprep.subr.bf16.mxu0 0
        %743 = vmatpush1.bf16.msra.mxu0 0
        %744 = vmatprep.subr.bf16.mxu0 0
        %745 = vmatpush1.bf16.msra.mxu0 0
        %746 = vmatprep.subr.bf16.mxu0 0
        %747 = vmatpush1.bf16.msra.mxu0 0
        %748 = vmatprep.subr.bf16.mxu0 0
        %749 = vmatpush1.bf16.msra.mxu0 0
        %750 = vmatprep.subr.bf16.mxu0 0
        %751 = vmatpush1.bf16.msra.mxu0 0
        %752 = vmatprep.subr.bf16.mxu0 0
        %753 = vmatpush1.bf16.msra.mxu0 0
        %754 = vmatprep.subr.bf16.mxu0 0
        %755 = vmatpush1.bf16.msra.mxu0 0
        %756 = vmatprep.subr.bf16.mxu0 0
        %757 = vmatpush1.bf16.msra.mxu0 0
        %758 = vmatprep.subr.bf16.mxu0 0
        %759 = vmatpush1.bf16.msra.mxu0 0
        %760 = vmatprep.mubr.bf16.mxu0 0
        %761 = vmatmul.mubr.bf16.gmra.mrb[0].mxu0 %v633
        %v762 = vpop.f32.mrb[0].mxu0
        %v763 = vadd.f32 0.0, %v762
        %v764 = vpop.f32.mrb[0].mxu0
        %v765 = vpop.f32.mrb[0].mxu0
        %v766 = vadd.f32 0.0, %v765
        %v767 = vpop.f32.mrb[0].mxu0
        %768 = vmatprep.mubr.bf16.mxu0 0
        %769 = vmatmul.mubr.bf16.gmra.mrb[0].mxu0 %v636
        %v770 = vpop.f32.mrb[0].mxu0
        %v771 = vadd.f32 0.0, %v770
        %v772 = vpop.f32.mrb[0].mxu0
        %v773 = vpop.f32.mrb[0].mxu0
        %v774 = vadd.f32 0.0, %v773
        %v775 = vpop.f32.mrb[0].mxu0
        %776 = vmatprep.mubr.bf16.mxu0 0
        %777 = vmatmul.mubr.bf16.gmra.mrb[0].mxu0 %v639
        %v778 = vpop.f32.mrb[0].mxu0
        %v779 = vadd.f32 0.0, %v778
        %v780 = vpop.f32.mrb[0].mxu0
        %v781 = vpop.f32.mrb[0].mxu0
        %v782 = vadd.f32 0.0, %v781
        %v783 = vpop.f32.mrb[0].mxu0
        %784 = vmatprep.mubr.bf16.mxu0 0
        %785 = vmatmul.mubr.bf16.gmra.mrb[0].mxu0 %v642
        %v786 = vpop.f32.mrb[0].mxu0
        %v787 = vadd.f32 0.0, %v786
        %v788 = vpop.f32.mrb[0].mxu0
        %v789 = vpop.f32.mrb[0].mxu0
        %v790 = vadd.f32 0.0, %v789
        %v791 = vpop.f32.mrb[0].mxu0
        %792 = vmatprep.mubr.bf16.mxu0 0
        %793 = vmatmul.mubr.bf16.gmra.mrb[0].mxu0 %v645
        %v794 = vpop.f32.mrb[0].mxu0
        %v795 = vadd.f32 0.0, %v794
        %v796 = vpop.f32.mrb[0].mxu0
        %v797 = vpop.f32.mrb[0].mxu0
        %v798 = vadd.f32 0.0, %v797
        %v799 = vpop.f32.mrb[0].mxu0
        %800 = vmatprep.mubr.bf16.mxu0 0
        %801 = vmatmul.mubr.bf16.gmra.mrb[0].mxu0 %v648
        %v802 = vpop.f32.mrb[0].mxu0
        %v803 = vadd.f32 0.0, %v802
        %v804 = vpop.f32.mrb[0].mxu0
        %v805 = vpop.f32.mrb[0].mxu0
        %v806 = vadd.f32 0.0, %v805
        %v807 = vpop.f32.mrb[0].mxu0
        %808 = vmatprep.mubr.bf16.mxu0 0
        %809 = vmatmul.mubr.bf16.gmra.mrb[0].mxu0 %v651
        %v810 = vpop.f32.mrb[0].mxu0
        %v811 = vadd.f32 0.0, %v810
        %v812 = vpop.f32.mrb[0].mxu0
        %v813 = vpop.f32.mrb[0].mxu0
        %v814 = vadd.f32 0.0, %v813
        %v815 = vpop.f32.mrb[0].mxu0
        %816 = vmatprep.mubr.bf16.mxu0 0
        %817 = vmatmul.mubr.bf16.gmra.mrb[0].mxu0 %v654
        %v818 = vpop.f32.mrb[0].mxu0
        %v819 = vadd.f32 0.0, %v818
        %v820 = vpop.f32.mrb[0].mxu0
        %v821 = vpop.f32.mrb[0].mxu0
        %v822 = vadd.f32 0.0, %v821
        %v823 = vpop.f32.mrb[0].mxu0
        %824 = vmatprep.mubr.bf16.mxu0 0
        %825 = vmatmul.mubr.bf16.gmra.mrb[0].mxu0 %v657
        %v826 = vpop.f32.mrb[0].mxu0
        %v827 = vadd.f32 0.0, %v826
        %v828 = vpop.f32.mrb[0].mxu0
        %v829 = vpop.f32.mrb[0].mxu0
        %v830 = vadd.f32 0.0, %v829
        %v831 = vpop.f32.mrb[0].mxu0
        %832 = vmatprep.mubr.bf16.mxu0 0
        %833 = vmatmul.mubr.bf16.gmra.mrb[0].mxu0 %v660
        %v834 = vpop.f32.mrb[0].mxu0
        %v835 = vadd.f32 0.0, %v834
        %v836 = vpop.f32.mrb[0].mxu0
        %v837 = vpop.f32.mrb[0].mxu0
        %v838 = vadd.f32 0.0, %v837
        %v839 = vpop.f32.mrb[0].mxu0
        %840 = vmatprep.mubr.bf16.mxu0 0
        %841 = vmatmul.mubr.bf16.gmra.mrb[0].mxu0 %v663
        %v842 = vpop.f32.mrb[0].mxu0
        %v843 = vadd.f32 0.0, %v842
        %v844 = vpop.f32.mrb[0].mxu0
        %v845 = vpop.f32.mrb[0].mxu0
        %v846 = vadd.f32 0.0, %v845
        %v847 = vpop.f32.mrb[0].mxu0
        %848 = vmatprep.mubr.bf16.mxu0 0
        %849 = vmatmul.mubr.bf16.gmra.mrb[0].mxu0 %v666
        %v850 = vpop.f32.mrb[0].mxu0
        %v851 = vadd.f32 0.0, %v850
        %v852 = vpop.f32.mrb[0].mxu0
        %v853 = vpop.f32.mrb[0].mxu0
        %v854 = vadd.f32 0.0, %v853
        %v855 = vpop.f32.mrb[0].mxu0
        %856 = vmatprep.mubr.bf16.mxu0 0
        %857 = vmatmul.mubr.bf16.gmra.mrb[0].mxu0 %v669
        %v858 = vpop.f32.mrb[0].mxu0
        %v859 = vadd.f32 0.0, %v858
        %v860 = vpop.f32.mrb[0].mxu0
        %v861 = vpop.f32.mrb[0].mxu0
        %v862 = vadd.f32 0.0, %v861
        %v863 = vpop.f32.mrb[0].mxu0
        %864 = vmatprep.mubr.bf16.mxu0 0
        %865 = vmatmul.mubr.bf16.gmra.mrb[0].mxu0 %v672
        %v866 = vpop.f32.mrb[0].mxu0
        %v867 = vadd.f32 0.0, %v866
        %v868 = vpop.f32.mrb[0].mxu0
        %v869 = vpop.f32.mrb[0].mxu0
        %v870 = vadd.f32 0.0, %v869
        %v871 = vpop.f32.mrb[0].mxu0
        %872 = vmatprep.mubr.bf16.mxu0 0
        %873 = vmatmul.mubr.bf16.gmra.mrb[0].mxu0 %v675
        %v874 = vpop.f32.mrb[0].mxu0
        %v875 = vadd.f32 0.0, %v874
        %v876 = vpop.f32.mrb[0].mxu0
        %v877 = vpop.f32.mrb[0].mxu0
        %v878 = vadd.f32 0.0, %v877
        %v879 = vpop.f32.mrb[0].mxu0
        %880 = vmatprep.mubr.bf16.mxu0 0
        %881 = vmatmul.mubr.bf16.gmra.mrb[0].mxu0 %v678
        %v882 = vpop.f32.mrb[0].mxu0
        %v883 = vadd.f32 0.0, %v882
        %v884 = vpop.f32.mrb[0].mxu0
        %v885 = vpop.f32.mrb[0].mxu0
        %v886 = vadd.f32 0.0, %v885
        %v887 = vpop.f32.mrb[0].mxu0
        %888 = vmatprep.mubr.bf16.mxu0 0
        %889 = vmatmul.mubr.bf16.gmra.mrb[0].mxu0 %v681
        %v890 = vpop.f32.mrb[0].mxu0
        %v891 = vadd.f32 0.0, %v890
        %v892 = vpop.f32.mrb[0].mxu0
        %v893 = vpop.f32.mrb[0].mxu0
        %v894 = vadd.f32 0.0, %v893
        %v895 = vpop.f32.mrb[0].mxu0
        %896 = vmatprep.mubr.bf16.mxu0 0
        %897 = vmatmul.mubr.bf16.gmra.mrb[0].mxu0 %v684
        %v898 = vpop.f32.mrb[0].mxu0
        %v899 = vadd.f32 0.0, %v898
        %v900 = vpop.f32.mrb[0].mxu0
        %v901 = vpop.f32.mrb[0].mxu0
        %v902 = vadd.f32 0.0, %v901
        %v903 = vpop.f32.mrb[0].mxu0
        %904 = vmatprep.mubr.bf16.mxu0 0
        %905 = vmatmul.mubr.bf16.gmra.mrb[0].mxu0 %v687
        %v906 = vpop.f32.mrb[0].mxu0
        %v907 = vadd.f32 0.0, %v906
        %v908 = vpop.f32.mrb[0].mxu0
        %v909 = vpop.f32.mrb[0].mxu0
        %v910 = vadd.f32 0.0, %v909
        %v911 = vpop.f32.mrb[0].mxu0
        %912 = vmatprep.mubr.bf16.mxu0 0
        %913 = vmatmul.mubr.bf16.gmra.mrb[0].mxu0 %v690
        %v914 = vpop.f32.mrb[0].mxu0
        %v915 = vadd.f32 0.0, %v914
        %v916 = vpop.f32.mrb[0].mxu0
        %v917 = vpop.f32.mrb[0].mxu0
        %v918 = vadd.f32 0.0, %v917
        %v919 = vpop.f32.mrb[0].mxu0
        %920 = vmatprep.mubr.bf16.mxu0 0
        %921 = vmatmul.mubr.bf16.gmra.mrb[0].mxu0 %v693
        %v922 = vpop.f32.mrb[0].mxu0
        %v923 = vadd.f32 0.0, %v922
        %v924 = vpop.f32.mrb[0].mxu0
        %v925 = vpop.f32.mrb[0].mxu0
        %v926 = vadd.f32 0.0, %v925
        %v927 = vpop.f32.mrb[0].mxu0
        %928 = vmatprep.mubr.bf16.mxu0 0
        %929 = vmatmul.mubr.bf16.gmra.mrb[0].mxu0 %v696
        %v930 = vpop.f32.mrb[0].mxu0
        %v931 = vadd.f32 0.0, %v930
        %v932 = vpop.f32.mrb[0].mxu0
        %v933 = vpop.f32.mrb[0].mxu0
        %v934 = vadd.f32 0.0, %v933
        %v935 = vpop.f32.mrb[0].mxu0
        %936 = vmatprep.mubr.bf16.mxu0 0
        %937 = vmatmul.mubr.bf16.gmra.mrb[0].mxu0 %v699
        %v938 = vpop.f32.mrb[0].mxu0
        %v939 = vadd.f32 0.0, %v938
        %v940 = vpop.f32.mrb[0].mxu0
        %v941 = vpop.f32.mrb[0].mxu0
        %v942 = vadd.f32 0.0, %v941
        %v943 = vpop.f32.mrb[0].mxu0
        %944 = vmatprep.mubr.bf16.mxu0 0
        %945 = vmatmul.mubr.bf16.gmra.mrb[0].mxu0 %v702
        %v946 = vpop.f32.mrb[0].mxu0
        %v947 = vadd.f32 0.0, %v946
        %v948 = vpop.f32.mrb[0].mxu0
        %v949 = vpop.f32.mrb[0].mxu0
        %v950 = vadd.f32 0.0, %v949
        %v951 = vpop.f32.mrb[0].mxu0
        %952 = vmatprep.mubr.bf16.mxu0 0
        %953 = vmatmul.mubr.bf16.gmra.mrb[0].mxu0 %v705
        %v954 = vpop.f32.mrb[0].mxu0
        %v955 = vadd.f32 0.0, %v954
        %v956 = vpop.f32.mrb[0].mxu0
        %v957 = vpop.f32.mrb[0].mxu0
        %v958 = vadd.f32 0.0, %v957
        %v959 = vpop.f32.mrb[0].mxu0
        %960 = vmatprep.mubr.bf16.mxu0 0
        %961 = vmatmul.mubr.bf16.gmra.mrb[0].mxu0 %v708
        %v962 = vpop.f32.mrb[0].mxu0
        %v963 = vadd.f32 0.0, %v962
        %v964 = vpop.f32.mrb[0].mxu0
        %v965 = vpop.f32.mrb[0].mxu0
        %v966 = vadd.f32 0.0, %v965
        %v967 = vpop.f32.mrb[0].mxu0
        %968 = vmatprep.mubr.bf16.mxu0 0
        %969 = vmatmul.mubr.bf16.gmra.mrb[0].mxu0 %v711
        %v970 = vpop.f32.mrb[0].mxu0
        %v971 = vadd.f32 0.0, %v970
        %v972 = vpop.f32.mrb[0].mxu0
        %v973 = vpop.f32.mrb[0].mxu0
        %v974 = vadd.f32 0.0, %v973
        %v975 = vpop.f32.mrb[0].mxu0
        %976 = vmatprep.mubr.bf16.mxu0 0
        %977 = vmatmul.mubr.bf16.gmra.mrb[0].mxu0 %v714
        %v978 = vpop.f32.mrb[0].mxu0
        %v979 = vadd.f32 0.0, %v978
        %v980 = vpop.f32.mrb[0].mxu0
        %v981 = vpop.f32.mrb[0].mxu0
        %v982 = vadd.f32 0.0, %v981
        %v983 = vpop.f32.mrb[0].mxu0
        %984 = vmatprep.mubr.bf16.mxu0 0
        %985 = vmatmul.mubr.bf16.gmra.mrb[0].mxu0 %v717
        %v986 = vpop.f32.mrb[0].mxu0
        %v987 = vadd.f32 0.0, %v986
        %v988 = vpop.f32.mrb[0].mxu0
        %v989 = vpop.f32.mrb[0].mxu0
        %v990 = vadd.f32 0.0, %v989
        %v991 = vpop.f32.mrb[0].mxu0
        %992 = vmatprep.mubr.bf16.mxu0 0
        %993 = vmatmul.mubr.bf16.gmra.mrb[0].mxu0 %v720
        %v994 = vpop.f32.mrb[0].mxu0
        %v995 = vadd.f32 0.0, %v994
        %v996 = vpop.f32.mrb[0].mxu0
        %v997 = vpop.f32.mrb[0].mxu0
        %v998 = vadd.f32 0.0, %v997
        %v999 = vpop.f32.mrb[0].mxu0
        %1000 = vmatprep.mubr.bf16.mxu0 0
        %1001 = vmatmul.mubr.bf16.gmra.mrb[0].mxu0 %v723
        %v1002 = vpop.f32.mrb[0].mxu0
        %v1003 = vadd.f32 0.0, %v1002
        %v1004 = vpop.f32.mrb[0].mxu0
        %v1005 = vpop.f32.mrb[0].mxu0
        %v1006 = vadd.f32 0.0, %v1005
        %v1007 = vpop.f32.mrb[0].mxu0
        %1008 = vmatprep.mubr.bf16.mxu0 0
        %1009 = vmatmul.mubr.bf16.gmra.mrb[0].mxu0 %v726
        %v1010 = vpop.f32.mrb[0].mxu0
        %v1011 = vadd.f32 0.0, %v1010
        %v1012 = vpop.f32.mrb[0].mxu0
        %v1013 = vpop.f32.mrb[0].mxu0
        %v1014 = vadd.f32 0.0, %v1013
        %v1015 = vpop.f32.mrb[0].mxu0
        %1016 = vdwg.mxu0
        %v1017 = vadd.f32 %v335, %v763
        %v1018 = vadd.f32 %v336, %v766
        %v1019 = vadd.f32 %v337, %v771
        %v1020 = vadd.f32 %v338, %v774
        %v1021 = vadd.f32 %v339, %v779
        %v1022 = vadd.f32 %v340, %v782
        %v1023 = vadd.f32 %v341, %v787
        %v1024 = vadd.f32 %v342, %v790
        %v1025 = vadd.f32 %v343, %v795
        %v1026 = vadd.f32 %v344, %v798
        %v1027 = vadd.f32 %v345, %v803
        %v1028 = vadd.f32 %v346, %v806
        %v1029 = vadd.f32 %v347, %v811
        %v1030 = vadd.f32 %v348, %v814
        %v1031 = vadd.f32 %v349, %v819
        %v1032 = vadd.f32 %v350, %v822
        %v1033 = vadd.f32 %v351, %v827
        %v1034 = vadd.f32 %v352, %v830
        %v1035 = vadd.f32 %v353, %v835
        %v1036 = vadd.f32 %v354, %v838
        %v1037 = vadd.f32 %v355, %v843
        %v1038 = vadd.f32 %v356, %v846
        %v1039 = vadd.f32 %v357, %v851
        %v1040 = vadd.f32 %v358, %v854
        %v1041 = vadd.f32 %v359, %v859
        %v1042 = vadd.f32 %v360, %v862
        %v1043 = vadd.f32 %v361, %v867
        %v1044 = vadd.f32 %v362, %v870
        %v1045 = vadd.f32 %v363, %v875
        %v1046 = vadd.f32 %v364, %v878
        %v1047 = vadd.f32 %v365, %v883
        %v1048 = vadd.f32 %v366, %v886
        %v1049 = vadd.f32 %v367, %v891
        %v1050 = vadd.f32 %v368, %v894
        %v1051 = vadd.f32 %v369, %v899
        %v1052 = vadd.f32 %v370, %v902
        %v1053 = vadd.f32 %v371, %v907
        %v1054 = vadd.f32 %v372, %v910
        %v1055 = vadd.f32 %v373, %v915
        %v1056 = vadd.f32 %v374, %v918
        %v1057 = vadd.f32 %v375, %v923
        %v1058 = vadd.f32 %v376, %v926
        %v1059 = vadd.f32 %v377, %v931
        %v1060 = vadd.f32 %v378, %v934
        %v1061 = vadd.f32 %v379, %v939
        %v1062 = vadd.f32 %v380, %v942
        %v1063 = vadd.f32 %v381, %v947
        %v1064 = vadd.f32 %v382, %v950
        %v1065 = vadd.f32 %v383, %v955
        %v1066 = vadd.f32 %v384, %v958
        %v1067 = vadd.f32 %v385, %v963
        %v1068 = vadd.f32 %v386, %v966
        %v1069 = vadd.f32 %v387, %v971
        %v1070 = vadd.f32 %v388, %v974
        %v1071 = vadd.f32 %v389, %v979
        %v1072 = vadd.f32 %v390, %v982
        %v1073 = vadd.f32 %v391, %v987
        %v1074 = vadd.f32 %v392, %v990
        %v1075 = vadd.f32 %v393, %v995
        %v1076 = vadd.f32 %v394, %v998
        %v1077 = vadd.f32 %v395, %v1003
        %v1078 = vadd.f32 %v396, %v1006
        %v1079 = vadd.f32 %v397, %v1011
        %v1080 = vadd.f32 %v398, %v1014
        %1081 = vst.msk [vmem:[#allocation2] sm:$0xff] %vm631, %v1017
        %1082 = vst.msk [vmem:[#allocation2 + $0x8] sm:$0xff] %vm631, %v1018
        %1083 = vst.msk [vmem:[#allocation2 + $0x10] sm:$0xff] %vm631, %v1019
        %1084 = vst.msk [vmem:[#allocation2 + $0x18] sm:$0xff] %vm631, %v1020
        %1085 = vst.msk [vmem:[#allocation2 + $0x20] sm:$0xff] %vm631, %v1021
        %1086 = vst.msk [vmem:[#allocation2 + $0x28] sm:$0xff] %vm631, %v1022
        %1087 = vst.msk [vmem:[#allocation2 + $0x30] sm:$0xff] %vm631, %v1023
        %1088 = vst.msk [vmem:[#allocation2 + $0x38] sm:$0xff] %vm631, %v1024
        %1089 = vst.msk [vmem:[#allocation2 + $0x40] sm:$0xff] %vm631, %v1025
        %1090 = vst.msk [vmem:[#allocation2 + $0x48] sm:$0xff] %vm631, %v1026
        %1091 = vst.msk [vmem:[#allocation2 + $0x50] sm:$0xff] %vm631, %v1027
        %1092 = vst.msk [vmem:[#allocation2 + $0x58] sm:$0xff] %vm631, %v1028
        %1093 = vst.msk [vmem:[#allocation2 + $0x60] sm:$0xff] %vm631, %v1029
        %1094 = vst.msk [vmem:[#allocation2 + $0x68] sm:$0xff] %vm631, %v1030
        %1095 = vst.msk [vmem:[#allocation2 + $0x70] sm:$0xff] %vm631, %v1031
        %1096 = vst.msk [vmem:[#allocation2 + $0x78] sm:$0xff] %vm631, %v1032
        %1097 = vst.msk [vmem:[#allocation2 + $0x80] sm:$0xff] %vm631, %v1033
        %1098 = vst.msk [vmem:[#allocation2 + $0x88] sm:$0xff] %vm631, %v1034
        %1099 = vst.msk [vmem:[#allocation2 + $0x90] sm:$0xff] %vm631, %v1035
        %1100 = vst.msk [vmem:[#allocation2 + $0x98] sm:$0xff] %vm631, %v1036
        %1101 = vst.msk [vmem:[#allocation2 + $0xa0] sm:$0xff] %vm631, %v1037
        %1102 = vst.msk [vmem:[#allocation2 + $0xa8] sm:$0xff] %vm631, %v1038
        %1103 = vst.msk [vmem:[#allocation2 + $0xb0] sm:$0xff] %vm631, %v1039
        %1104 = vst.msk [vmem:[#allocation2 + $0xb8] sm:$0xff] %vm631, %v1040
        %1105 = vst.msk [vmem:[#allocation2 + $0xc0] sm:$0xff] %vm631, %v1041
        %1106 = vst.msk [vmem:[#allocation2 + $0xc8] sm:$0xff] %vm631, %v1042
        %1107 = vst.msk [vmem:[#allocation2 + $0xd0] sm:$0xff] %vm631, %v1043
        %1108 = vst.msk [vmem:[#allocation2 + $0xd8] sm:$0xff] %vm631, %v1044
        %1109 = vst.msk [vmem:[#allocation2 + $0xe0] sm:$0xff] %vm631, %v1045
        %1110 = vst.msk [vmem:[#allocation2 + $0xe8] sm:$0xff] %vm631, %v1046
        %1111 = vst.msk [vmem:[#allocation2 + $0xf0] sm:$0xff] %vm631, %v1047
        %1112 = vst.msk [vmem:[#allocation2 + $0xf8] sm:$0xff] %vm631, %v1048
        %1113 = vst.msk [vmem:[#allocation2 + $0x100] sm:$0xff] %vm631, %v1049
        %1114 = vst.msk [vmem:[#allocation2 + $0x108] sm:$0xff] %vm631, %v1050
        %1115 = vst.msk [vmem:[#allocation2 + $0x110] sm:$0xff] %vm631, %v1051
        %1116 = vst.msk [vmem:[#allocation2 + $0x118] sm:$0xff] %vm631, %v1052
        %1117 = vst.msk [vmem:[#allocation2 + $0x120] sm:$0xff] %vm631, %v1053
        %1118 = vst.msk [vmem:[#allocation2 + $0x128] sm:$0xff] %vm631, %v1054
        %1119 = vst.msk [vmem:[#allocation2 + $0x130] sm:$0xff] %vm631, %v1055
        %1120 = vst.msk [vmem:[#allocation2 + $0x138] sm:$0xff] %vm631, %v1056
        %1121 = vst.msk [vmem:[#allocation2 + $0x140] sm:$0xff] %vm631, %v1057
        %1122 = vst.msk [vmem:[#allocation2 + $0x148] sm:$0xff] %vm631, %v1058
        %1123 = vst.msk [vmem:[#allocation2 + $0x150] sm:$0xff] %vm631, %v1059
        %1124 = vst.msk [vmem:[#allocation2 + $0x158] sm:$0xff] %vm631, %v1060
        %1125 = vst.msk [vmem:[#allocation2 + $0x160] sm:$0xff] %vm631, %v1061
        %1126 = vst.msk [vmem:[#allocation2 + $0x168] sm:$0xff] %vm631, %v1062
        %1127 = vst.msk [vmem:[#allocation2 + $0x170] sm:$0xff] %vm631, %v1063
        %1128 = vst.msk [vmem:[#allocation2 + $0x178] sm:$0xff] %vm631, %v1064
        %1129 = vst.msk [vmem:[#allocation2 + $0x180] sm:$0xff] %vm631, %v1065
        %1130 = vst.msk [vmem:[#allocation2 + $0x188] sm:$0xff] %vm631, %v1066
        %1131 = vst.msk [vmem:[#allocation2 + $0x190] sm:$0xff] %vm631, %v1067
        %1132 = vst.msk [vmem:[#allocation2 + $0x198] sm:$0xff] %vm631, %v1068
        %1133 = vst.msk [vmem:[#allocation2 + $0x1a0] sm:$0xff] %vm631, %v1069
        %1134 = vst.msk [vmem:[#allocation2 + $0x1a8] sm:$0xff] %vm631, %v1070
        %1135 = vst.msk [vmem:[#allocation2 + $0x1b0] sm:$0xff] %vm631, %v1071
        %1136 = vst.msk [vmem:[#allocation2 + $0x1b8] sm:$0xff] %vm631, %v1072
        %1137 = vst.msk [vmem:[#allocation2 + $0x1c0] sm:$0xff] %vm631, %v1073
        %1138 = vst.msk [vmem:[#allocation2 + $0x1c8] sm:$0xff] %vm631, %v1074
        %1139 = vst.msk [vmem:[#allocation2 + $0x1d0] sm:$0xff] %vm631, %v1075
        %1140 = vst.msk [vmem:[#allocation2 + $0x1d8] sm:$0xff] %vm631, %v1076
        %1141 = vst.msk [vmem:[#allocation2 + $0x1e0] sm:$0xff] %vm631, %v1077
        %1142 = vst.msk [vmem:[#allocation2 + $0x1e8] sm:$0xff] %vm631, %v1078
        %1143 = vst.msk [vmem:[#allocation2 + $0x1f0] sm:$0xff] %vm631, %v1079
        %1144 = vst.msk [vmem:[#allocation2 + $0x1f8] sm:$0xff] %vm631, %v1080
        // Predicated region
        $region41: #{_matmul_impl.1} parent=31 // pred_check
          %p1145 = pneg %p266
        $region42: #{_matmul_impl.1} parent=31 // pred_check_branch
          %1147 = sbr.rel (%p1145) target = $region44
        $region43: #{_matmul_impl.1} parent=31 // pred_region
          %v1148 = vld [vmem:[#allocation2] sm:$0xff]
          %v1149 = vld [vmem:[#allocation2 + $0x8] sm:$0xff]
          %v1150 = vld [vmem:[#allocation2 + $0x10] sm:$0xff]
          %v1151 = vld [vmem:[#allocation2 + $0x18] sm:$0xff]
          %v1152 = vld [vmem:[#allocation2 + $0x20] sm:$0xff]
          %v1153 = vld [vmem:[#allocation2 + $0x28] sm:$0xff]
          %v1154 = vld [vmem:[#allocation2 + $0x30] sm:$0xff]
          %v1155 = vld [vmem:[#allocation2 + $0x38] sm:$0xff]
          %v1156 = vld [vmem:[#allocation2 + $0x40] sm:$0xff]
          %v1157 = vld [vmem:[#allocation2 + $0x48] sm:$0xff]
          %v1158 = vld [vmem:[#allocation2 + $0x50] sm:$0xff]
          %v1159 = vld [vmem:[#allocation2 + $0x58] sm:$0xff]
          %v1160 = vld [vmem:[#allocation2 + $0x60] sm:$0xff]
          %v1161 = vld [vmem:[#allocation2 + $0x68] sm:$0xff]
          %v1162 = vld [vmem:[#allocation2 + $0x70] sm:$0xff]
          %v1163 = vld [vmem:[#allocation2 + $0x78] sm:$0xff]
          %v1164 = vld [vmem:[#allocation2 + $0x80] sm:$0xff]
          %v1165 = vld [vmem:[#allocation2 + $0x88] sm:$0xff]
          %v1166 = vld [vmem:[#allocation2 + $0x90] sm:$0xff]
          %v1167 = vld [vmem:[#allocation2 + $0x98] sm:$0xff]
          %v1168 = vld [vmem:[#allocation2 + $0xa0] sm:$0xff]
          %v1169 = vld [vmem:[#allocation2 + $0xa8] sm:$0xff]
          %v1170 = vld [vmem:[#allocation2 + $0xb0] sm:$0xff]
          %v1171 = vld [vmem:[#allocation2 + $0xb8] sm:$0xff]
          %v1172 = vld [vmem:[#allocation2 + $0xc0] sm:$0xff]
          %v1173 = vld [vmem:[#allocation2 + $0xc8] sm:$0xff]
          %v1174 = vld [vmem:[#allocation2 + $0xd0] sm:$0xff]
          %v1175 = vld [vmem:[#allocation2 + $0xd8] sm:$0xff]
          %v1176 = vld [vmem:[#allocation2 + $0xe0] sm:$0xff]
          %v1177 = vld [vmem:[#allocation2 + $0xe8] sm:$0xff]
          %v1178 = vld [vmem:[#allocation2 + $0xf0] sm:$0xff]
          %v1179 = vld [vmem:[#allocation2 + $0xf8] sm:$0xff]
          %v1180 = vld [vmem:[#allocation2 + $0x100] sm:$0xff]
          %v1181 = vld [vmem:[#allocation2 + $0x108] sm:$0xff]
          %v1182 = vld [vmem:[#allocation2 + $0x110] sm:$0xff]
          %v1183 = vld [vmem:[#allocation2 + $0x118] sm:$0xff]
          %v1184 = vld [vmem:[#allocation2 + $0x120] sm:$0xff]
          %v1185 = vld [vmem:[#allocation2 + $0x128] sm:$0xff]
          %v1186 = vld [vmem:[#allocation2 + $0x130] sm:$0xff]
          %v1187 = vld [vmem:[#allocation2 + $0x138] sm:$0xff]
          %v1188 = vld [vmem:[#allocation2 + $0x140] sm:$0xff]
          %v1189 = vld [vmem:[#allocation2 + $0x148] sm:$0xff]
          %v1190 = vld [vmem:[#allocation2 + $0x150] sm:$0xff]
          %v1191 = vld [vmem:[#allocation2 + $0x158] sm:$0xff]
          %v1192 = vld [vmem:[#allocation2 + $0x160] sm:$0xff]
          %v1193 = vld [vmem:[#allocation2 + $0x168] sm:$0xff]
          %v1194 = vld [vmem:[#allocation2 + $0x170] sm:$0xff]
          %v1195 = vld [vmem:[#allocation2 + $0x178] sm:$0xff]
          %v1196 = vld [vmem:[#allocation2 + $0x180] sm:$0xff]
          %v1197 = vld [vmem:[#allocation2 + $0x188] sm:$0xff]
          %v1198 = vld [vmem:[#allocation2 + $0x190] sm:$0xff]
          %v1199 = vld [vmem:[#allocation2 + $0x198] sm:$0xff]
          %v1200 = vld [vmem:[#allocation2 + $0x1a0] sm:$0xff]
          %v1201 = vld [vmem:[#allocation2 + $0x1a8] sm:$0xff]
          %v1202 = vld [vmem:[#allocation2 + $0x1b0] sm:$0xff]
          %v1203 = vld [vmem:[#allocation2 + $0x1b8] sm:$0xff]
          %v1204 = vld [vmem:[#allocation2 + $0x1c0] sm:$0xff]
          %v1205 = vld [vmem:[#allocation2 + $0x1c8] sm:$0xff]
          %v1206 = vld [vmem:[#allocation2 + $0x1d0] sm:$0xff]
          %v1207 = vld [vmem:[#allocation2 + $0x1d8] sm:$0xff]
          %v1208 = vld [vmem:[#allocation2 + $0x1e0] sm:$0xff]
          %v1209 = vld [vmem:[#allocation2 + $0x1e8] sm:$0xff]
          %v1210 = vld [vmem:[#allocation2 + $0x1f0] sm:$0xff]
          %v1211 = vld [vmem:[#allocation2 + $0x1f8] sm:$0xff]
          %v1212 = vld [vmem:[#allocation3] sm:$0x1]
          %v1214 = vlaneseq
          %v1215 = vshrl.u32 %v1214, 7
          %v1216 = vsub.s32 0, %v1215
          %v1217 = vrot.slane %v1212, %v1216
          %v1219 = vadd.f32 %v1148, %v1217
          %v1220 = vadd.f32 %v1149, %v1217
          %v1221 = vadd.f32 %v1150, %v1217
          %v1222 = vadd.f32 %v1151, %v1217
          %v1223 = vadd.f32 %v1152, %v1217
          %v1224 = vadd.f32 %v1153, %v1217
          %v1225 = vadd.f32 %v1154, %v1217
          %v1226 = vadd.f32 %v1155, %v1217
          %v1227 = vadd.f32 %v1156, %v1217
          %v1228 = vadd.f32 %v1157, %v1217
          %v1229 = vadd.f32 %v1158, %v1217
          %v1230 = vadd.f32 %v1159, %v1217
          %v1231 = vadd.f32 %v1160, %v1217
          %v1232 = vadd.f32 %v1161, %v1217
          %v1233 = vadd.f32 %v1162, %v1217
          %v1234 = vadd.f32 %v1163, %v1217
          %v1235 = vadd.f32 %v1164, %v1217
          %v1236 = vadd.f32 %v1165, %v1217
          %v1237 = vadd.f32 %v1166, %v1217
          %v1238 = vadd.f32 %v1167, %v1217
          %v1239 = vadd.f32 %v1168, %v1217
          %v1240 = vadd.f32 %v1169, %v1217
          %v1241 = vadd.f32 %v1170, %v1217
          %v1242 = vadd.f32 %v1171, %v1217
          %v1243 = vadd.f32 %v1172, %v1217
          %v1244 = vadd.f32 %v1173, %v1217
          %v1245 = vadd.f32 %v1174, %v1217
          %v1246 = vadd.f32 %v1175, %v1217
          %v1247 = vadd.f32 %v1176, %v1217
          %v1248 = vadd.f32 %v1177, %v1217
          %v1249 = vadd.f32 %v1178, %v1217
          %v1250 = vadd.f32 %v1179, %v1217
          %v1251 = vadd.f32 %v1180, %v1217
          %v1252 = vadd.f32 %v1181, %v1217
          %v1253 = vadd.f32 %v1182, %v1217
          %v1254 = vadd.f32 %v1183, %v1217
          %v1255 = vadd.f32 %v1184, %v1217
          %v1256 = vadd.f32 %v1185, %v1217
          %v1257 = vadd.f32 %v1186, %v1217
          %v1258 = vadd.f32 %v1187, %v1217
          %v1259 = vadd.f32 %v1188, %v1217
          %v1260 = vadd.f32 %v1189, %v1217
          %v1261 = vadd.f32 %v1190, %v1217
          %v1262 = vadd.f32 %v1191, %v1217
          %v1263 = vadd.f32 %v1192, %v1217
          %v1264 = vadd.f32 %v1193, %v1217
          %v1265 = vadd.f32 %v1194, %v1217
          %v1266 = vadd.f32 %v1195, %v1217
          %v1267 = vadd.f32 %v1196, %v1217
          %v1268 = vadd.f32 %v1197, %v1217
          %v1269 = vadd.f32 %v1198, %v1217
          %v1270 = vadd.f32 %v1199, %v1217
          %v1271 = vadd.f32 %v1200, %v1217
          %v1272 = vadd.f32 %v1201, %v1217
          %v1273 = vadd.f32 %v1202, %v1217
          %v1274 = vadd.f32 %v1203, %v1217
          %v1275 = vadd.f32 %v1204, %v1217
          %v1276 = vadd.f32 %v1205, %v1217
          %v1277 = vadd.f32 %v1206, %v1217
          %v1278 = vadd.f32 %v1207, %v1217
          %v1279 = vadd.f32 %v1208, %v1217
          %v1280 = vadd.f32 %v1209, %v1217
          %v1281 = vadd.f32 %v1210, %v1217
          %v1282 = vadd.f32 %v1211, %v1217
          %1283 = vst.msk [vmem:[%s263] sm:$0xff] %vm631, %v1219
          %1284 = vst.msk [vmem:[%s263 + $0x8] sm:$0xff] %vm631, %v1220
          %1285 = vst.msk [vmem:[%s263 + $0x10] sm:$0xff] %vm631, %v1221
          %1286 = vst.msk [vmem:[%s263 + $0x18] sm:$0xff] %vm631, %v1222
          %1287 = vst.msk [vmem:[%s263 + $0x20] sm:$0xff] %vm631, %v1223
          %1288 = vst.msk [vmem:[%s263 + $0x28] sm:$0xff] %vm631, %v1224
          %1289 = vst.msk [vmem:[%s263 + $0x30] sm:$0xff] %vm631, %v1225
          %1290 = vst.msk [vmem:[%s263 + $0x38] sm:$0xff] %vm631, %v1226
          %1291 = vst.msk [vmem:[%s263 + $0x40] sm:$0xff] %vm631, %v1227
          %1292 = vst.msk [vmem:[%s263 + $0x48] sm:$0xff] %vm631, %v1228
          %1293 = vst.msk [vmem:[%s263 + $0x50] sm:$0xff] %vm631, %v1229
          %1294 = vst.msk [vmem:[%s263 + $0x58] sm:$0xff] %vm631, %v1230
          %1295 = vst.msk [vmem:[%s263 + $0x60] sm:$0xff] %vm631, %v1231
          %1296 = vst.msk [vmem:[%s263 + $0x68] sm:$0xff] %vm631, %v1232
          %1297 = vst.msk [vmem:[%s263 + $0x70] sm:$0xff] %vm631, %v1233
          %1298 = vst.msk [vmem:[%s263 + $0x78] sm:$0xff] %vm631, %v1234
          %1299 = vst.msk [vmem:[%s263 + $0x80] sm:$0xff] %vm631, %v1235
          %1300 = vst.msk [vmem:[%s263 + $0x88] sm:$0xff] %vm631, %v1236
          %1301 = vst.msk [vmem:[%s263 + $0x90] sm:$0xff] %vm631, %v1237
          %1302 = vst.msk [vmem:[%s263 + $0x98] sm:$0xff] %vm631, %v1238
          %1303 = vst.msk [vmem:[%s263 + $0xa0] sm:$0xff] %vm631, %v1239
          %1304 = vst.msk [vmem:[%s263 + $0xa8] sm:$0xff] %vm631, %v1240
          %1305 = vst.msk [vmem:[%s263 + $0xb0] sm:$0xff] %vm631, %v1241
          %1306 = vst.msk [vmem:[%s263 + $0xb8] sm:$0xff] %vm631, %v1242
          %1307 = vst.msk [vmem:[%s263 + $0xc0] sm:$0xff] %vm631, %v1243
          %1308 = vst.msk [vmem:[%s263 + $0xc8] sm:$0xff] %vm631, %v1244
          %1309 = vst.msk [vmem:[%s263 + $0xd0] sm:$0xff] %vm631, %v1245
          %1310 = vst.msk [vmem:[%s263 + $0xd8] sm:$0xff] %vm631, %v1246
          %1311 = vst.msk [vmem:[%s263 + $0xe0] sm:$0xff] %vm631, %v1247
          %1312 = vst.msk [vmem:[%s263 + $0xe8] sm:$0xff] %vm631, %v1248
          %1313 = vst.msk [vmem:[%s263 + $0xf0] sm:$0xff] %vm631, %v1249
          %1314 = vst.msk [vmem:[%s263 + $0xf8] sm:$0xff] %vm631, %v1250
          %1315 = vst.msk [vmem:[%s263 + $0x100] sm:$0xff] %vm631, %v1251
          %1316 = vst.msk [vmem:[%s263 + $0x108] sm:$0xff] %vm631, %v1252
          %1317 = vst.msk [vmem:[%s263 + $0x110] sm:$0xff] %vm631, %v1253
          %1318 = vst.msk [vmem:[%s263 + $0x118] sm:$0xff] %vm631, %v1254
          %1319 = vst.msk [vmem:[%s263 + $0x120] sm:$0xff] %vm631, %v1255
          %1320 = vst.msk [vmem:[%s263 + $0x128] sm:$0xff] %vm631, %v1256
          %1321 = vst.msk [vmem:[%s263 + $0x130] sm:$0xff] %vm631, %v1257
          %1322 = vst.msk [vmem:[%s263 + $0x138] sm:$0xff] %vm631, %v1258
          %1323 = vst.msk [vmem:[%s263 + $0x140] sm:$0xff] %vm631, %v1259
          %1324 = vst.msk [vmem:[%s263 + $0x148] sm:$0xff] %vm631, %v1260
          %1325 = vst.msk [vmem:[%s263 + $0x150] sm:$0xff] %vm631, %v1261
          %1326 = vst.msk [vmem:[%s263 + $0x158] sm:$0xff] %vm631, %v1262
          %1327 = vst.msk [vmem:[%s263 + $0x160] sm:$0xff] %vm631, %v1263
          %1328 = vst.msk [vmem:[%s263 + $0x168] sm:$0xff] %vm631, %v1264
          %1329 = vst.msk [vmem:[%s263 + $0x170] sm:$0xff] %vm631, %v1265
          %1330 = vst.msk [vmem:[%s263 + $0x178] sm:$0xff] %vm631, %v1266
          %1331 = vst.msk [vmem:[%s263 + $0x180] sm:$0xff] %vm631, %v1267
          %1332 = vst.msk [vmem:[%s263 + $0x188] sm:$0xff] %vm631, %v1268
          %1333 = vst.msk [vmem:[%s263 + $0x190] sm:$0xff] %vm631, %v1269
          %1334 = vst.msk [vmem:[%s263 + $0x198] sm:$0xff] %vm631, %v1270
          %1335 = vst.msk [vmem:[%s263 + $0x1a0] sm:$0xff] %vm631, %v1271
          %1336 = vst.msk [vmem:[%s263 + $0x1a8] sm:$0xff] %vm631, %v1272
          %1337 = vst.msk [vmem:[%s263 + $0x1b0] sm:$0xff] %vm631, %v1273
          %1338 = vst.msk [vmem:[%s263 + $0x1b8] sm:$0xff] %vm631, %v1274
          %1339 = vst.msk [vmem:[%s263 + $0x1c0] sm:$0xff] %vm631, %v1275
          %1340 = vst.msk [vmem:[%s263 + $0x1c8] sm:$0xff] %vm631, %v1276
          %1341 = vst.msk [vmem:[%s263 + $0x1d0] sm:$0xff] %vm631, %v1277
          %1342 = vst.msk [vmem:[%s263 + $0x1d8] sm:$0xff] %vm631, %v1278
          %1343 = vst.msk [vmem:[%s263 + $0x1e0] sm:$0xff] %vm631, %v1279
          %1344 = vst.msk [vmem:[%s263 + $0x1e8] sm:$0xff] %vm631, %v1280
          %1345 = vst.msk [vmem:[%s263 + $0x1f0] sm:$0xff] %vm631, %v1281
          %1346 = vst.msk [vmem:[%s263 + $0x1f8] sm:$0xff] %vm631, %v1282
        $region44: #{_matmul_impl.1} parent=31 // pred_fallthru
          _
        %s1347 = smul.u32 64, %s20
        %p1348 = scmp.lt.s32.totalorder %s1347, 511
        %s1349 = scalar_select %p1348, %s1347, 511
        %p1350 = scmp.lt.s32.totalorder %s21, 0
        %s1351 = scalar_select %p1350, %s21, 0
        %s1352 = sadd.s32 %s1351, %s1349
        %s1353 = smul.addr %s1352, 8
        %s1354 = scalar_lea.vmem %s3, %s1353
        // Predicated region
        $region45: #{_matmul_impl.1} parent=31 // pred_check
          %p1355 = pneg %p136
        $region46: #{_matmul_impl.1} parent=31 // pred_check_branch
          %1357 = sbr.rel (%p1355) target = $region48
        $region47: #{_matmul_impl.1} parent=31 // pred_region
          %s1358 = smul.u32 64, %s20
        $region48: #{_matmul_impl.1} parent=31 // pred_fallthru
          _
      $region32: #{_matmul_impl.1} parent=5 // pred_fallthru
        _
      %p1359 = scmp.le.s32.totalorder 2, %s10
      // Predicated region
      $region49: #{_matmul_impl.1} parent=5 // pred_check
        %p1360 = pneg %p1359
      $region50: #{_matmul_impl.1} parent=5 // pred_check_branch
        %1362 = sbr.rel (%p1360) target = $region52
      $region51: #{_matmul_impl.1} parent=5 // pred_region
        %s1363 = ssub.s32 %s10, 2
        // Predicated region
        $region53: #{_matmul_impl.1} parent=51 // pred_check
          %p1364 = pneg %p142
        $region54: #{_matmul_impl.1} parent=51 // pred_check_branch
          %1366 = sbr.rel (%p1364) target = $region56
        $region55: #{_matmul_impl.1} parent=51 // pred_region
          %s1367 = smul.u32 64, %s23
          %p1368 = scmp.lt.s32.totalorder %s1367, 511
          %s1369 = scalar_select %p1368, %s1367, 511
          %p1370 = scmp.lt.s32.totalorder %s24, 0
          %s1371 = scalar_select %p1370, %s24, 0
          %s1372 = sadd.s32 %s1371, %s1369
          %s1373 = smul.addr %s1372, 8
          %s1374 = scalar_lea.vmem %s3, %s1373
        $region56: #{_matmul_impl.1} parent=51 // pred_fallthru
          _
      $region52: #{_matmul_impl.1} parent=5 // pred_fallthru
        _
    $region6: #{_matmul_impl.1} parent=1 // loop_footer
      %s14 = sadd.s32 1, %s10
    $region7: #{_matmul_impl.1} parent=1 // loop_footer_branch
      %9 = sbr.rel target = $region3
    $region8: #{_matmul_impl.1} parent=1 // loop_exit
      _
    %1375 = vsyncpa [#allocation4], 1
    %s1376 = scalar_lea.sflag [#allocation4], 1
    %1377 = vsyncpa %s1376, 1

</llo_original>
